<compile_context>
chip_gen: v5e
topology: v5e:2x2
jax: 0.10.0
libtpu: 0.0.40
codegen_flags: <defaults>
</compile_context>

<pallas_src>
import functools
import re

import jax
import jax.numpy as jnp
from jax import lax
from jax.experimental import pallas as pl
from jax.experimental.pallas import tpu as pltpu


# ----------------------------------------------------------------------------
# Generation-aware tuning & tiling helpers
# ----------------------------------------------------------------------------

def _round_up(x, m):
    return ((x + m - 1) // m) * m


@functools.lru_cache(maxsize=None)
def _tpu_config():
    """Per-generation tuning: (vmem_ceiling_bytes, tile_cap, batch_cap_bytes,
    bf16_exp_ok)."""
    gen = 0
    try:
        kind = jax.devices()[0].device_kind.lower()
        m = re.search(r"(\d+)", kind)
        if m:
            gen = int(m.group(1))
    except Exception:  # defensive: fall through to conservative defaults
        gen = 0
    if gen >= 7:        # v7x: 64 MiB VMEM / TensorCore, bf16 EUP.
        return (40 << 20, 512, 10 << 20, True)
    if gen == 6:        # v6e: 128 MiB VMEM, bf16 EUP.
        return (96 << 20, 1024, 24 << 20, True)
    if gen in (4, 5):   # v4 / v5e / v5p: 128 MiB VMEM, f32-only EUP/VPU.
        return (96 << 20, 1024, 24 << 20, False)
    return (32 << 20, 512, 8 << 20, False)   # unknown / old: conservative.


def _pick_tile(n, cap, align=128):
    """Largest divisor of n that is a multiple of `align` and <= cap (else n)."""
    # TODO(synk): if n % 128 != 0 AND n is large this falls back to a full-n
    # block; such shapes never occur for power-of-two BigGAN feature maps.
    if n % align != 0:
        return n
    best = align
    t = align
    while t <= min(n, cap):
        if n % t == 0:
            best = t
        t += align
    return best


def _pick_batch_block(b, per_item_bytes, cap_bytes):
    """Largest divisor of b whose per-grid-step footprint stays under cap."""
    best = 1
    for d in range(1, b + 1):
        if b % d == 0 and d * per_item_bytes <= cap_bytes:
            best = d
    return best


def _vmem_limit(estimate_bytes, ceiling_bytes):
    return int(min(ceiling_bytes, max(32 << 20, int(1.4 * estimate_bytes))))


# ----------------------------------------------------------------------------
# Kernel 1: fused QKV projection (the three 1x1 convs as one packed matmul)
# ----------------------------------------------------------------------------

def _qkv_proj_kernel(x_ref, w_ref, b_ref, q_ref, k_ref, v_ref, *, cqp):
    # x_ref: (1, C, tn) f32; w_ref: (Kp, C) compute dtype; b_ref: (Kp, 1) f32.
    x = x_ref[0].astype(w_ref.dtype)                           # (C, tn)
    # One packed MXU matmul for Wq/Wk/Wv; bias broadcast happens exactly once.
    qkv = jnp.dot(w_ref[...], x,
                  preferred_element_type=jnp.float32) + b_ref[...]
    # cqp is a multiple of 16 -> sublane-aligned slices and unmasked stores.
    q_ref[0] = qkv[:cqp].astype(q_ref.dtype)
    k_ref[0] = qkv[cqp:2 * cqp].astype(k_ref.dtype)
    v_ref[0] = qkv[2 * cqp:].astype(v_ref.dtype)


def fused_qkv_projection(x, w_packed, b_packed, cqp, *, compute_dtype):
    """x: (B, C, N) f32 -> q, k: (B, cqp, N), v: (B, C, N) in compute_dtype."""
    B, C, N = x.shape
    Kp = w_packed.shape[0]
    cb = jnp.dtype(compute_dtype).itemsize
    vmem_ceiling, _, _, _ = _tpu_config()

    def _est(tn_):
        return (2 * C * tn_ * 4            # x (double-buffered, f32)
                + 2 * Kp * C * cb          # packed weight (2 buffers)
                + 2 * Kp * 4               # packed bias
                + 2 * Kp * tn_ * cb        # q/k/v outputs (double-buffered)
                + Kp * tn_ * 4)            # f32 qkv temporary

    tn = _pick_tile(N, cap=2048)
    while tn > 128 and N % 128 == 0 and _est(tn) > int(0.8 * vmem_ceiling):
        tn = _pick_tile(N, cap=tn - 128)

    grid = (B, N // tn)
    kernel = functools.partial(_qkv_proj_kernel, cqp=cqp)
    return pl.pallas_call(
        kernel,
        out_shape=(
            jax.ShapeDtypeStruct((B, cqp, N), compute_dtype),
            jax.ShapeDtypeStruct((B, cqp, N), compute_dtype),
            jax.ShapeDtypeStruct((B, C, N), compute_dtype),
        ),
        grid_spec=pltpu.PrefetchScalarGridSpec(
            num_scalar_prefetch=0,
            grid=grid,
            in_specs=[
                pl.BlockSpec((1, C, tn), lambda b, n: (b, 0, n)),   # x
                pl.BlockSpec((Kp, C), lambda b, n: (0, 0)),         # W packed
                pl.BlockSpec((Kp, 1), lambda b, n: (0, 0)),         # b packed
            ],
            out_specs=(
                pl.BlockSpec((1, cqp, tn), lambda b, n: (b, 0, n)),
                pl.BlockSpec((1, cqp, tn), lambda b, n: (b, 0, n)),
                pl.BlockSpec((1, C, tn), lambda b, n: (b, 0, n)),
            ),
        ),
        compiler_params=pltpu.CompilerParams(
            dimension_semantics=("parallel", "parallel"),
            vmem_limit_bytes=_vmem_limit(_est(tn), vmem_ceiling)),
    )(x, w_packed, b_packed)


# ----------------------------------------------------------------------------
# Kernel 2: flash-style attention with VMEM-resident K/V + fused gamma-residual
# ----------------------------------------------------------------------------

def _flash_attn_kernel(q_ref, k_ref, v_ref, x_ref, gamma_ref, o_ref,
                       m_sc, l_sc, acc_sc, *, tk, exp_dtype, approx_recip,
                       max_unroll=16):
    # q_ref: (bblk, Cqp, tq); k_ref: (bblk, Cqp, N); v_ref: (bblk, C, N)
    # x_ref/o_ref: (bblk, C, tq).  K/V are VMEM-resident for the whole batch
    # block (their block index is constant over the query-tile grid axis, so
    # Pallas only DMAs them when the batch block changes).
    m_sc[...] = jnp.full(m_sc.shape, -jnp.inf, m_sc.dtype)
    l_sc[...] = jnp.zeros(l_sc.shape, l_sc.dtype)
    acc_sc[...] = jnp.zeros(acc_sc.shape, acc_sc.dtype)

    q = q_ref[...]
    n_kv = k_ref.shape[2] // tk

    def kv_step(start):
        k = k_ref[:, :, pl.ds(start, tk)]            # (bblk, Cqp, tk)
        v = v_ref[:, :, pl.ds(start, tk)]            # (bblk, C,  tk)
        # s[b, j, i] = sum_c k[b, c, j] * q[b, c, i]  == energy^T for the tile;
        # (kv, query) layout: softmax reduction over sublanes, PV matmul below
        # needs no big transpose, stores stay lane-dense.
        s = lax.dot_general(k, q, (((1,), (1,)), ((0,), (0,))),
                            preferred_element_type=jnp.float32)  # (bblk,tk,tq)
        m_prev = m_sc[...]                                        # (bblk,1,tq)
        m_new = jnp.maximum(m_prev, jnp.max(s, axis=1, keepdims=True))
        alpha = jnp.exp(m_prev - m_new)                           # tiny, f32
        # exp in bf16 on v6e/v7x (bf16 EUP), f32 on v5e/older (review).
        p = jnp.exp((s - m_new).astype(exp_dtype))
        l_sc[...] = alpha * l_sc[...] + jnp.sum(
            p.astype(jnp.float32), axis=1, keepdims=True)
        p_mm = p if p.dtype == v.dtype else p.astype(v.dtype)
        pv = lax.dot_general(v, p_mm, (((2,), (1,)), ((0,), (0,))),
                             preferred_element_type=jnp.float32)  # (bblk,C,tq)
        acc_sc[...] = alpha * acc_sc[...] + pv
        m_sc[...] = m_new

    if n_kv <= max_unroll:
        # Static unroll: all kv slices are static, full LLO scheduler visibility.
        for ki in range(n_kv):
            kv_step(ki * tk)
    else:
        # Large-N fallback: rolled loop with aligned dynamic lane slices.
        def body(ki, carry):
            kv_step(pl.multiple_of(ki * tk, tk))
            return carry
        lax.fori_loop(0, n_kv, body, 0)

    inv_l = pl.reciprocal(l_sc[...], approx=approx_recip)         # (bblk,1,tq)
    gamma = gamma_ref[0]                                          # SMEM scalar
    # gamma folded into the reciprocal: saves a full (bblk, C, tq) multiply.
    o_ref[...] = (acc_sc[...] * (gamma * inv_l) + x_ref[...]).astype(o_ref.dtype)


def flash_self_attention(q, k, v, x, gamma, *, compute_dtype,
                         tq_cap=None, tk_cap=None):
    """q,k: (B,Cqp,N), v,x: (B,C,N); returns gamma*attention + x as (B,C,N)."""
    B, Cqp, N = q.shape
    C = v.shape[1]
    cb = jnp.dtype(compute_dtype).itemsize
    vmem_ceiling, tile_cap, batch_cap, bf16_exp_ok = _tpu_config()
    tq = _pick_tile(N, cap=(tq_cap or tile_cap))
    tk = _pick_tile(N, cap=(tk_cap or tile_cap))

    # Per-batch-item footprint: double-buffered q/x/out tiles, resident
    # (double-buffered) K/V, f32 accumulators, plus ~3 (tk, tq) f32-equivalent
    # temporaries for s / exp / p (review: don't undercount on v7x).
    per_item = (2 * Cqp * tq * cb            # q tile
                + 2 * Cqp * N * cb           # K resident
                + 2 * C * N * cb             # V resident
                + 2 * C * tq * 4             # x tile (f32)
                + 2 * C * tq * 4             # out tile (f32)
                + C * tq * 4 + 2 * tq * 4    # acc / m / l scratch
                + 3 * tk * tq * 4)           # s, exp, p temporaries
    bblk = _pick_batch_block(B, per_item, cap_bytes=batch_cap)
    est = bblk * per_item + (1 << 20)

    exp_dtype = (jnp.bfloat16
                 if (bf16_exp_ok
                     and jnp.dtype(compute_dtype) == jnp.dtype(jnp.bfloat16))
                 else jnp.float32)
    grid = (B // bblk, N // tq)
    kernel = functools.partial(
        _flash_attn_kernel, tk=tk, exp_dtype=exp_dtype,
        approx_recip=(jnp.dtype(compute_dtype) == jnp.dtype(jnp.bfloat16)))
    return pl.pallas_call(
        kernel,
        out_shape=jax.ShapeDtypeStruct((B, C, N), x.dtype),
        grid_spec=pltpu.PrefetchScalarGridSpec(
            num_scalar_prefetch=0,
            grid=grid,
            in_specs=[
                pl.BlockSpec((bblk, Cqp, tq), lambda b, qi: (b, 0, qi)),  # q
                pl.BlockSpec((bblk, Cqp, N), lambda b, qi: (b, 0, 0)),    # K
                pl.BlockSpec((bblk, C, N), lambda b, qi: (b, 0, 0)),      # V
                pl.BlockSpec((bblk, C, tq), lambda b, qi: (b, 0, qi)),    # x
                pl.BlockSpec(memory_space=pltpu.MemorySpace.SMEM),        # gamma
            ],
            out_specs=pl.BlockSpec((bblk, C, tq), lambda b, qi: (b, 0, qi)),
            scratch_shapes=[
                pltpu.VMEM((bblk, 1, tq), jnp.float32),    # running max
                pltpu.VMEM((bblk, 1, tq), jnp.float32),    # running denominator
                pltpu.VMEM((bblk, C, tq), jnp.float32),    # output accumulator
            ],
        ),
        compiler_params=pltpu.CompilerParams(
            # Both grid axes independent -> both v7x TensorCores get work even
            # when B // bblk == 1; the kv reduction lives inside the kernel.
            dimension_semantics=("parallel", "parallel"),
            vmem_limit_bytes=_vmem_limit(est, vmem_ceiling)),
    )(q, k, v, x, gamma)


def self_attention_forward(x_nchw, params, *, compute_dtype=jnp.bfloat16,
                           tq_cap=None, tk_cap=None):
    """SelfAttention.forward: (B, C, H, W) -> (B, C, H, W)."""
    B, C, H, W = x_nchw.shape
    N = H * W
    x = x_nchw.reshape(B, C, N)
    cq = params["wq"].shape[0]
    # Pad cq to a sublane-aligned width (zeros -> padded q/k rows are exactly
    # zero, energy unchanged); gives aligned slices/stores in both kernels.
    cqp = _round_up(cq, 16)
    pad = cqp - cq
    wq = jnp.pad(params["wq"], ((0, pad), (0, 0)))
    wk = jnp.pad(params["wk"], ((0, pad), (0, 0)))
    bq = jnp.pad(params["bq"], ((0, pad), (0, 0)))
    bk = jnp.pad(params["bk"], ((0, pad), (0, 0)))
    w_packed = jnp.concatenate([wq, wk, params["wv"]], 0).astype(compute_dtype)
    b_packed = jnp.concatenate([bq, bk, params["bv"]], 0).astype(jnp.float32)
    q, k, v = fused_qkv_projection(x, w_packed, b_packed, cqp,
                                   compute_dtype=compute_dtype)
    gamma = params["gamma"].reshape(-1).astype(jnp.float32)
    out = flash_self_attention(q, k, v, x, gamma, compute_dtype=compute_dtype,
                               tq_cap=tq_cap, tk_cap=tk_cap)
    return out.reshape(B, C, H, W)


def reference_self_attention(x_nchw, params):
    """Pure-JAX reference mirroring SelfAttention.forward."""
    B, C, H, W = x_nchw.shape
    N = H * W
    hp = "highest"
    x = x_nchw.reshape(B, C, N)
    q = jnp.einsum("oc,bcn->bon", params["wq"], x, precision=hp) + params["bq"][None]
    k = jnp.einsum("oc,bcn->bon", params["wk"], x, precision=hp) + params["bk"][None]
    v = jnp.einsum("oc,bcn->bon", params["wv"], x, precision=hp) + params["bv"][None]
    energy = jnp.einsum("bci,bcj->bij", q, k, precision=hp)
    attn = jax.nn.softmax(energy, axis=-1)
    out = jnp.einsum("bcj,bij->bci", v, attn, precision=hp)
    out = params["gamma"][0] * out + x
    return out.reshape(B, C, H, W)


# ----------------------------------------------------------------------------
# Discriminator graph (plain XLA ops around the Pallas attention kernels)
# ----------------------------------------------------------------------------
# TODO(synk): the 3x3 convs / avg-pool / fc / embedding stay as XLA ops -- no
# clean Pallas win at these sizes; SelfAttention is the Pallas-kernelized part.

def _conv2d(x, w, b, padding):
    out = lax.conv_general_dilated(
        x, w, window_strides=(1, 1),
        padding=((padding, padding), (padding, padding)),
        dimension_numbers=("NCHW", "OIHW", "NCHW"))
    return out + b[None, :, None, None]


def _avg_pool2(x):
    B, C, H, W = x.shape
    return x.reshape(B, C, H // 2, 2, W // 2, 2).mean(axis=(3, 5))


def _res_block_discriminator(x, p):
    h = jax.nn.relu(x)
    h = _conv2d(h, p["w1"], p["b1"], padding=1)
    h = jax.nn.relu(h)
    h = _conv2d(h, p["w2"], p["b2"], padding=1)
    h = _avg_pool2(h)
    x = _avg_pool2(x)
    return h + _conv2d(x, p["ws"], p["bs"], padding=0)


def discriminator_forward(x, class_labels, params, attention_fn):
    h = _conv2d(x, params["conv_in_w"], params["conv_in_b"], padding=1)
    for i, bp in enumerate(params["res_blocks"]):
        h = _res_block_discriminator(h, bp)
        if i == 0:
            h = attention_fn(h, params["attention"])
    h = jax.nn.relu(h)
    h = h.reshape(h.shape[0], -1)
    out = h @ params["fc_w"].T + params["fc_b"][None, :]
    emb = params["embed_w"][class_labels.reshape(-1)]
    return out + jnp.sum(emb * h, axis=1, keepdims=True)


# ----------------------------------------------------------------------------
# Parameter initialization (spectral-normalized, mirrors the torch module)
# ----------------------------------------------------------------------------

def spectral_normalize(w2d):
    # NOTE: exact SVD instead of PyTorch's one-step power iteration
    # (the converged limit of nn.utils.spectral_norm).
    sigma = jnp.linalg.svd(w2d, compute_uv=False)[0]
    return w2d / sigma


def _sn_conv_weight(key, out_ch, in_ch, ksize):
    w = jax.random.normal(key, (out_ch, in_ch, ksize, ksize), jnp.float32) * 0.15
    return spectral_normalize(w.reshape(out_ch, -1)).reshape(w.shape)


def init_attention_params(key, in_dim):
    assert in_dim >= 8, "SelfAttention needs in_dim // 8 >= 1"
    cq = in_dim // 8
    k1, k2, k3, k4, k5, k6 = jax.random.split(key, 6)
    wq = spectral_normalize(jax.random.normal(k1, (cq, in_dim), jnp.float32) * 0.2)
    wk = spectral_normalize(jax.random.normal(k2, (cq, in_dim), jnp.float32) * 0.2)
    wv = spectral_normalize(jax.random.normal(k3, (in_dim, in_dim), jnp.float32) * 0.2)
    bq = jax.random.normal(k4, (cq, 1), jnp.float32) * 0.05
    bk = jax.random.normal(k5, (cq, 1), jnp.float32) * 0.05
    bv = jax.random.normal(k6, (in_dim, 1), jnp.float32) * 0.05
    gamma = jnp.zeros((1,), jnp.float32)      # module init: gamma = 0
    return dict(wq=wq, wk=wk, wv=wv, bq=bq, bk=bk, bv=bv, gamma=gamma)


def init_discriminator_params(key, channel_width=8, num_classes=10):
    keys = iter(jax.random.split(key, 24))
    cw = channel_width
    params = {
        "conv_in_w": _sn_conv_weight(next(keys), cw, 1, 3),
        "conv_in_b": jnp.zeros((cw,), jnp.float32),
    }
    chans = [cw, 2 * cw, 4 * cw, 8 * cw, 16 * cw, 16 * cw]
    blocks = []
    for i in range(5):
        cin, cout = chans[i], chans[i + 1]
        blocks.append(dict(
            w1=_sn_conv_weight(next(keys), cout, cin, 3),
            b1=jnp.zeros((cout,), jnp.float32),
            w2=_sn_conv_weight(next(keys), cout, cout, 3),
            b2=jnp.zeros((cout,), jnp.float32),
            ws=_sn_conv_weight(next(keys), cout, cin, 1),
            bs=jnp.zeros((cout,), jnp.float32)))
    params["res_blocks"] = blocks
    params["attention"] = init_attention_params(next(keys), 2 * cw)
    feat = 16 * cw * 4 * 4
    params["fc_w"] = spectral_normalize(
        jax.random.normal(next(keys), (1, feat), jnp.float32) * 0.1)
    params["fc_b"] = jnp.zeros((1,), jnp.float32)
    params["embed_w"] = spectral_normalize(
        jax.random.normal(next(keys), (num_classes, feat), jnp.float32) * 0.1)
    return params


# ----------------------------------------------------------------------------
# Demo / checks
# ----------------------------------------------------------------------------

if __name__ == "__main__":
    key = jax.random.PRNGKey(0)
    k_x1, k_p1, k_x2, k_p2, k_xd, k_pd, k_lbl = jax.random.split(key, 7)

    # 1) SelfAttention kernel, f32 compute path.  Small forced tiles so the
    #    multi-query-tile grid AND the in-kernel resident-KV online-softmax
    #    loop (n_kv > 1) are both exercised.
    x1 = jax.random.normal(k_x1, (2, 16, 16, 16), jnp.float32)
    p1 = init_attention_params(k_p1, 16)
    p1 = dict(p1, gamma=jnp.full((1,), 0.5, jnp.float32))  # exercise attention
    attn_f32 = jax.jit(functools.partial(self_attention_forward,
                                         compute_dtype=jnp.float32,
                                         tq_cap=128, tk_cap=128))
    out1 = jax.block_until_ready(attn_f32(x1, p1))
    ref1 = reference_self_attention(x1, p1)
    assert jnp.allclose(out1, ref1, atol=1e-2, rtol=1e-2), (
        "f32 attention mismatch: %e" % float(jnp.max(jnp.abs(out1 - ref1))))

    # 2) bf16 MXU operands / f32 accumulation (bf16 exp where the generation
    #    supports it), forced multi-chunk kv loop at N = 1024.
    x2 = jax.random.normal(k_x2, (2, 32, 32, 32), jnp.float32)
    p2 = init_attention_params(k_p2, 32)
    p2 = dict(p2, gamma=jnp.full((1,), 0.5, jnp.float32))
    attn_bf16 = jax.jit(functools.partial(self_attention_forward,
                                          compute_dtype=jnp.bfloat16,
                                          tq_cap=256, tk_cap=256))
    out2 = jax.block_until_ready(attn_bf16(x2, p2))
    ref2 = reference_self_attention(x2, p2)
    assert jnp.allclose(out2, ref2, atol=4e-2, rtol=4e-2), (
        "bf16 attention mismatch: %e" % float(jnp.max(jnp.abs(out2 - ref2))))

    # 3) Full Discriminator forward with the Pallas attention inside.
    #    128x128 input -> attention runs at N = 64*64 = 4096, exercising the
    #    resident-KV flash tiling at a realistic BigGAN sequence length
    #    (the fc layer of the torch module implies a 128x128 input).
    xd = jax.random.normal(k_xd, (2, 1, 128, 128), jnp.float32)
    labels = jax.random.randint(k_lbl, (2,), 0, 10)
    dparams = init_discriminator_params(k_pd, channel_width=8, num_classes=10)
    dparams["attention"] = dict(dparams["attention"],
                                gamma=jnp.full((1,), 0.3, jnp.float32))

    disc_f32 = jax.jit(lambda x, l, p: discriminator_forward(
        x, l, p, functools.partial(self_attention_forward,
                                   compute_dtype=jnp.float32)))
    disc_bf16 = jax.jit(lambda x, l, p: discriminator_forward(
        x, l, p, functools.partial(self_attention_forward,
                                   compute_dtype=jnp.bfloat16)))
    disc_ref = jax.jit(lambda x, l, p: discriminator_forward(
        x, l, p, reference_self_attention))

    out_f = jax.block_until_ready(disc_f32(xd, labels, dparams))
    out_b = jax.block_until_ready(disc_bf16(xd, labels, dparams))
    ref_d = jax.block_until_ready(disc_ref(xd, labels, dparams))
    scale = float(jnp.max(jnp.abs(ref_d))) + 1.0
    assert float(jnp.max(jnp.abs(out_f - ref_d))) <= 2e-2 * scale, "f32 disc"
    assert float(jnp.max(jnp.abs(out_b - ref_d))) <= 7e-2 * scale, "bf16 disc"

    print("KERNEL_OK")
</pallas_src>

<mosaic_0001>
module attributes {stable_mosaic.version = 11 : i64} {
  func.func @_qkv_proj_kernel(%arg0: i32, %arg1: i32, %arg2: memref<1x16x256xf32, #tpu.memory_space<vmem>>, %arg3: memref<48x16xf32, #tpu.memory_space<vmem>>, %arg4: memref<48x1xf32, #tpu.memory_space<vmem>>, %arg5: memref<1x16x256xf32, #tpu.memory_space<vmem>>, %arg6: memref<1x16x256xf32, #tpu.memory_space<vmem>>, %arg7: memref<1x16x256xf32, #tpu.memory_space<vmem>>) attributes {dimension_semantics = [#tpu.dimension_semantics<parallel>, #tpu.dimension_semantics<parallel>], iteration_bounds = array<i64: 2, 1>, scalar_prefetch = 0 : i64, scratch_operands = 0 : i64, tpu.core_type = #tpu.core_type<tc>, window_params = [{transform_indices = @transform_0, window_bounds = array<i64: 1, 16, 256>}, {pipeline_mode = #tpu.pipeline_mode<synchronous>, transform_indices = @transform_1, window_bounds = array<i64: 48, 16>}, {pipeline_mode = #tpu.pipeline_mode<synchronous>, transform_indices = @transform_2, window_bounds = array<i64: 48, 1>}, {transform_indices = @transform_3, window_bounds = array<i64: 1, 16, 256>}, {transform_indices = @transform_4, window_bounds = array<i64: 1, 16, 256>}, {transform_indices = @transform_5, window_bounds = array<i64: 1, 16, 256>}]} {
    %c0 = arith.constant 0 : index
    %c0_0 = arith.constant 0 : index
    %c0_1 = arith.constant 0 : index
    %0 = vector.load %arg2[%c0, %c0_0, %c0_1] : memref<1x16x256xf32, #tpu.memory_space<vmem>>, vector<1x16x256xf32>
    %1 = vector.shape_cast %0 : vector<1x16x256xf32> to vector<16x256xf32>
    %c0_2 = arith.constant 0 : index
    %c0_3 = arith.constant 0 : index
    %2 = vector.load %arg3[%c0_2, %c0_3] : memref<48x16xf32, #tpu.memory_space<vmem>>, vector<48x16xf32>
    %cst = arith.constant dense<0.000000e+00> : vector<48x256xf32>
    %3 = tpu.matmul %2, %1, %cst {dimension_numbers = #tpu.dot_dimension_numbers<[1], [0], [0], [1], [0, 0, 1, 1], [], []>} : vector<48x16xf32>, vector<16x256xf32>, vector<48x256xf32> -> vector<48x256xf32>
    %c0_4 = arith.constant 0 : index
    %c0_5 = arith.constant 0 : index
    %4 = vector.load %arg4[%c0_4, %c0_5] : memref<48x1xf32, #tpu.memory_space<vmem>>, vector<48x1xf32>
    %5 = vector.broadcast %4 : vector<48x1xf32> to vector<48x256xf32>
    %6 = arith.addf %3, %5 : vector<48x256xf32>
    %7 = vector.extract_strided_slice %6 {offsets = [0, 0], sizes = [16, 256], strides = [1, 1]} : vector<48x256xf32> to vector<16x256xf32>
    %c0_6 = arith.constant 0 : index
    %c0_7 = arith.constant 0 : index
    %c0_8 = arith.constant 0 : index
    %8 = vector.load %arg5[%c0_6, %c0_7, %c0_8] : memref<1x16x256xf32, #tpu.memory_space<vmem>>, vector<1x16x256xf32>
    %9 = vector.shape_cast %8 : vector<1x16x256xf32> to vector<16x256xf32>
    %10 = vector.shape_cast %7 : vector<16x256xf32> to vector<1x16x256xf32>
    tpu.vector_store %arg5[%c0_6, %c0_7, %c0_8], %10 {strides = array<i32>} : memref<1x16x256xf32, #tpu.memory_space<vmem>>, vector<1x16x256xf32>,
    %11 = vector.extract_strided_slice %6 {offsets = [16, 0], sizes = [16, 256], strides = [1, 1]} : vector<48x256xf32> to vector<16x256xf32>
    %c0_9 = arith.constant 0 : index
    %c0_10 = arith.constant 0 : index
    %c0_11 = arith.constant 0 : index
    %12 = vector.load %arg6[%c0_9, %c0_10, %c0_11] : memref<1x16x256xf32, #tpu.memory_space<vmem>>, vector<1x16x256xf32>
    %13 = vector.shape_cast %12 : vector<1x16x256xf32> to vector<16x256xf32>
    %14 = vector.shape_cast %11 : vector<16x256xf32> to vector<1x16x256xf32>
    tpu.vector_store %arg6[%c0_9, %c0_10, %c0_11], %14 {strides = array<i32>} : memref<1x16x256xf32, #tpu.memory_space<vmem>>, vector<1x16x256xf32>,
    %15 = vector.extract_strided_slice %6 {offsets = [32, 0], sizes = [16, 256], strides = [1, 1]} : vector<48x256xf32> to vector<16x256xf32>
    %c0_12 = arith.constant 0 : index
    %c0_13 = arith.constant 0 : index
    %c0_14 = arith.constant 0 : index
    %16 = vector.load %arg7[%c0_12, %c0_13, %c0_14] : memref<1x16x256xf32, #tpu.memory_space<vmem>>, vector<1x16x256xf32>
    %17 = vector.shape_cast %16 : vector<1x16x256xf32> to vector<16x256xf32>
    %18 = vector.shape_cast %15 : vector<16x256xf32> to vector<1x16x256xf32>
    tpu.vector_store %arg7[%c0_12, %c0_13, %c0_14], %18 {strides = array<i32>} : memref<1x16x256xf32, #tpu.memory_space<vmem>>, vector<1x16x256xf32>,
    return
  }
  func.func @transform_0(%arg0: i32, %arg1: i32) -> (i32, i32, i32) {
    %c0_i32 = arith.constant 0 : i32
    %c0_i32_0 = arith.constant 0 : i32
    return %arg0, %c0_i32, %arg1 : i32, i32, i32
  }
  func.func @transform_1(%arg0: i32, %arg1: i32) -> (i32, i32) {
    %c0_i32 = arith.constant 0 : i32
    %c0_i32_0 = arith.constant 0 : i32
    %c0_i32_1 = arith.constant 0 : i32
    return %c0_i32, %c0_i32_0 : i32, i32
  }
  func.func @transform_2(%arg0: i32, %arg1: i32) -> (i32, i32) {
    %c0_i32 = arith.constant 0 : i32
    %c0_i32_0 = arith.constant 0 : i32
    %c0_i32_1 = arith.constant 0 : i32
    return %c0_i32, %c0_i32_0 : i32, i32
  }
  func.func @transform_3(%arg0: i32, %arg1: i32) -> (i32, i32, i32) {
    %c0_i32 = arith.constant 0 : i32
    %c0_i32_0 = arith.constant 0 : i32
    return %arg0, %c0_i32, %arg1 : i32, i32, i32
  }
  func.func @transform_4(%arg0: i32, %arg1: i32) -> (i32, i32, i32) {
    %c0_i32 = arith.constant 0 : i32
    %c0_i32_0 = arith.constant 0 : i32
    return %arg0, %c0_i32, %arg1 : i32, i32, i32
  }
  func.func @transform_5(%arg0: i32, %arg1: i32) -> (i32, i32, i32) {
    %c0_i32 = arith.constant 0 : i32
    %c0_i32_0 = arith.constant 0 : i32
    return %arg0, %c0_i32, %arg1 : i32, i32, i32
  }
}

module attributes {stable_mosaic.version = 11 : i64} {
  func.func @_flash_attn_kernel(%arg0: i32, %arg1: i32, %arg2: memref<2x16x128xf32, #tpu.memory_space<vmem>>, %arg3: memref<2x16x256xf32, #tpu.memory_space<vmem>>, %arg4: memref<2x16x256xf32, #tpu.memory_space<vmem>>, %arg5: memref<2x16x128xf32, #tpu.memory_space<vmem>>, %arg6: memref<1xf32, #tpu.memory_space<smem>>, %arg7: memref<2x16x128xf32, #tpu.memory_space<vmem>>, %arg8: memref<2x1x128xf32, #tpu.memory_space<vmem>>, %arg9: memref<2x1x128xf32, #tpu.memory_space<vmem>>, %arg10: memref<2x16x128xf32, #tpu.memory_space<vmem>>) attributes {dimension_semantics = [#tpu.dimension_semantics<parallel>, #tpu.dimension_semantics<parallel>], iteration_bounds = array<i64: 1, 2>, scalar_prefetch = 0 : i64, scratch_operands = 3 : i64, tpu.core_type = #tpu.core_type<tc>, window_params = [{transform_indices = @transform_0, window_bounds = array<i64: 2, 16, 128>}, {transform_indices = @transform_1, window_bounds = array<i64: 2, 16, 256>}, {transform_indices = @transform_2, window_bounds = array<i64: 2, 16, 256>}, {transform_indices = @transform_3, window_bounds = array<i64: 2, 16, 128>}, {transform_indices = @transform_4, window_bounds = array<i64: 1>}, {transform_indices = @transform_5, window_bounds = array<i64: 2, 16, 128>}]} {
    %cst = arith.constant 0xFF800000 : f32
    %0 = vector.broadcast %cst : f32 to vector<2x1x128xf32>
    %c0 = arith.constant 0 : index
    %c0_0 = arith.constant 0 : index
    %c0_1 = arith.constant 0 : index
    %1 = vector.load %arg8[%c0, %c0_0, %c0_1] : memref<2x1x128xf32, #tpu.memory_space<vmem>>, vector<2x1x128xf32>
    tpu.vector_store %arg8[%c0, %c0_0, %c0_1], %0 {strides = array<i32>} : memref<2x1x128xf32, #tpu.memory_space<vmem>>, vector<2x1x128xf32>,
    %cst_2 = arith.constant 0.000000e+00 : f32
    %2 = vector.broadcast %cst_2 : f32 to vector<2x1x128xf32>
    %c0_3 = arith.constant 0 : index
    %c0_4 = arith.constant 0 : index
    %c0_5 = arith.constant 0 : index
    %3 = vector.load %arg9[%c0_3, %c0_4, %c0_5] : memref<2x1x128xf32, #tpu.memory_space<vmem>>, vector<2x1x128xf32>
    tpu.vector_store %arg9[%c0_3, %c0_4, %c0_5], %2 {strides = array<i32>} : memref<2x1x128xf32, #tpu.memory_space<vmem>>, vector<2x1x128xf32>,
    %cst_6 = arith.constant 0.000000e+00 : f32
    %4 = vector.broadcast %cst_6 : f32 to vector<2x16x128xf32>
    %c0_7 = arith.constant 0 : index
    %c0_8 = arith.constant 0 : index
    %c0_9 = arith.constant 0 : index
    %5 = vector.load %arg10[%c0_7, %c0_8, %c0_9] : memref<2x16x128xf32, #tpu.memory_space<vmem>>, vector<2x16x128xf32>
    tpu.vector_store %arg10[%c0_7, %c0_8, %c0_9], %4 {strides = array<i32>} : memref<2x16x128xf32, #tpu.memory_space<vmem>>, vector<2x16x128xf32>,
    %c0_10 = arith.constant 0 : index
    %c0_11 = arith.constant 0 : index
    %c0_12 = arith.constant 0 : index
    %6 = vector.load %arg2[%c0_10, %c0_11, %c0_12] : memref<2x16x128xf32, #tpu.memory_space<vmem>>, vector<2x16x128xf32>
    %c0_13 = arith.constant 0 : index
    %c0_14 = arith.constant 0 : index
    %c0_15 = arith.constant 0 : index
    %7 = vector.load %arg3[%c0_13, %c0_14, %c0_15] : memref<2x16x256xf32, #tpu.memory_space<vmem>>, vector<2x16x128xf32>
    %c0_16 = arith.constant 0 : index
    %c0_17 = arith.constant 0 : index
    %c0_18 = arith.constant 0 : index
    %8 = vector.load %arg4[%c0_16, %c0_17, %c0_18] : memref<2x16x256xf32, #tpu.memory_space<vmem>>, vector<2x16x128xf32>
    %cst_19 = arith.constant dense<0.000000e+00> : vector<2x128x128xf32>
    %9 = tpu.matmul %7, %6, %cst_19 {dimension_numbers = #tpu.dot_dimension_numbers<[1], [1], [2], [2], [0, 0, 0, 2, 1, 2], [0], [0]>} : vector<2x16x128xf32>, vector<2x16x128xf32>, vector<2x128x128xf32> -> vector<2x128x128xf32>
    %c0_20 = arith.constant 0 : index
    %c0_21 = arith.constant 0 : index
    %c0_22 = arith.constant 0 : index
    %10 = vector.load %arg8[%c0_20, %c0_21, %c0_22] : memref<2x1x128xf32, #tpu.memory_space<vmem>>, vector<2x1x128xf32>
    %cst_23 = arith.constant dense<0xFF800000> : vector<2x128xf32>
    %11 = vector.multi_reduction <maximumf>, %9, %cst_23 [1] : vector<2x128x128xf32> to vector<2x128xf32>
    %12 = vector.shape_cast %11 : vector<2x128xf32> to vector<2x1x128xf32>
    %13 = arith.maximumf %10, %12 : vector<2x1x128xf32>
    %14 = arith.subf %10, %13 : vector<2x1x128xf32>
    %15 = math.exp %14 : vector<2x1x128xf32>
    %16 = vector.broadcast %13 : vector<2x1x128xf32> to vector<2x128x128xf32>
    %17 = arith.subf %9, %16 : vector<2x128x128xf32>
    %18 = math.exp %17 : vector<2x128x128xf32>
    %c0_24 = arith.constant 0 : index
    %c0_25 = arith.constant 0 : index
    %c0_26 = arith.constant 0 : index
    %19 = vector.load %arg9[%c0_24, %c0_25, %c0_26] : memref<2x1x128xf32, #tpu.memory_space<vmem>>, vector<2x1x128xf32>
    %20 = arith.mulf %15, %19 : vector<2x1x128xf32>
    %cst_27 = arith.constant dense<0.000000e+00> : vector<2x128xf32>
    %21 = vector.multi_reduction <add>, %18, %cst_27 [1] : vector<2x128x128xf32> to vector<2x128xf32>
    %22 = vector.shape_cast %21 : vector<2x128xf32> to vector<2x1x128xf32>
    %23 = arith.addf %20, %22 : vector<2x1x128xf32>
    %c0_28 = arith.constant 0 : index
    %c0_29 = arith.constant 0 : index
    %c0_30 = arith.constant 0 : index
    %24 = vector.load %arg9[%c0_28, %c0_29, %c0_30] : memref<2x1x128xf32, #tpu.memory_space<vmem>>, vector<2x1x128xf32>
    tpu.vector_store %arg9[%c0_28, %c0_29, %c0_30], %23 {strides = array<i32>} : memref<2x1x128xf32, #tpu.memory_space<vmem>>, vector<2x1x128xf32>,
    %cst_31 = arith.constant dense<0.000000e+00> : vector<2x16x128xf32>
    %25 = tpu.matmul %8, %18, %cst_31 {dimension_numbers = #tpu.dot_dimension_numbers<[2], [1], [1], [2], [0, 0, 0, 1, 1, 2], [0], [0]>} : vector<2x16x128xf32>, vector<2x128x128xf32>, vector<2x16x128xf32> -> vector<2x16x128xf32>
    %c0_32 = arith.constant 0 : index
    %c0_33 = arith.constant 0 : index
    %c0_34 = arith.constant 0 : index
    %26 = vector.load %arg10[%c0_32, %c0_33, %c0_34] : memref<2x16x128xf32, #tpu.memory_space<vmem>>, vector<2x16x128xf32>
    %27 = vector.broadcast %15 : vector<2x1x128xf32> to vector<2x16x128xf32>
    %28 = arith.mulf %27, %26 : vector<2x16x128xf32>
    %29 = arith.addf %28, %25 : vector<2x16x128xf32>
    %c0_35 = arith.constant 0 : index
    %c0_36 = arith.constant 0 : index
    %c0_37 = arith.constant 0 : index
    %30 = vector.load %arg10[%c0_35, %c0_36, %c0_37] : memref<2x16x128xf32, #tpu.memory_space<vmem>>, vector<2x16x128xf32>
    tpu.vector_store %arg10[%c0_35, %c0_36, %c0_37], %29 {strides = array<i32>} : memref<2x16x128xf32, #tpu.memory_space<vmem>>, vector<2x16x128xf32>,
    %c0_38 = arith.constant 0 : index
    %c0_39 = arith.constant 0 : index
    %c0_40 = arith.constant 0 : index
    %31 = vector.load %arg8[%c0_38, %c0_39, %c0_40] : memref<2x1x128xf32, #tpu.memory_space<vmem>>, vector<2x1x128xf32>
    tpu.vector_store %arg8[%c0_38, %c0_39, %c0_40], %13 {strides = array<i32>} : memref<2x1x128xf32, #tpu.memory_space<vmem>>, vector<2x1x128xf32>,
    %c0_41 = arith.constant 0 : index
    %c0_42 = arith.constant 0 : index
    %c128 = arith.constant 128 : index
    %32 = vector.load %arg3[%c0_41, %c0_42, %c128] : memref<2x16x256xf32, #tpu.memory_space<vmem>>, vector<2x16x128xf32>
    %c0_43 = arith.constant 0 : index
    %c0_44 = arith.constant 0 : index
    %c128_45 = arith.constant 128 : index
    %33 = vector.load %arg4[%c0_43, %c0_44, %c128_45] : memref<2x16x256xf32, #tpu.memory_space<vmem>>, vector<2x16x128xf32>
    %cst_46 = arith.constant dense<0.000000e+00> : vector<2x128x128xf32>
    %34 = tpu.matmul %32, %6, %cst_46 {dimension_numbers = #tpu.dot_dimension_numbers<[1], [1], [2], [2], [0, 0, 0, 2, 1, 2], [0], [0]>} : vector<2x16x128xf32>, vector<2x16x128xf32>, vector<2x128x128xf32> -> vector<2x128x128xf32>
    %c0_47 = arith.constant 0 : index
    %c0_48 = arith.constant 0 : index
    %c0_49 = arith.constant 0 : index
    %35 = vector.load %arg8[%c0_47, %c0_48, %c0_49] : memref<2x1x128xf32, #tpu.memory_space<vmem>>, vector<2x1x128xf32>
    %cst_50 = arith.constant dense<0xFF800000> : vector<2x128xf32>
    %36 = vector.multi_reduction <maximumf>, %34, %cst_50 [1] : vector<2x128x128xf32> to vector<2x128xf32>
    %37 = vector.shape_cast %36 : vector<2x128xf32> to vector<2x1x128xf32>
    %38 = arith.maximumf %35, %37 : vector<2x1x128xf32>
    %39 = arith.subf %35, %38 : vector<2x1x128xf32>
    %40 = math.exp %39 : vector<2x1x128xf32>
    %41 = vector.broadcast %38 : vector<2x1x128xf32> to vector<2x128x128xf32>
    %42 = arith.subf %34, %41 : vector<2x128x128xf32>
    %43 = math.exp %42 : vector<2x128x128xf32>
    %c0_51 = arith.constant 0 : index
    %c0_52 = arith.constant 0 : index
    %c0_53 = arith.constant 0 : index
    %44 = vector.load %arg9[%c0_51, %c0_52, %c0_53] : memref<2x1x128xf32, #tpu.memory_space<vmem>>, vector<2x1x128xf32>
    %45 = arith.mulf %40, %44 : vector<2x1x128xf32>
    %cst_54 = arith.constant dense<0.000000e+00> : vector<2x128xf32>
    %46 = vector.multi_reduction <add>, %43, %cst_54 [1] : vector<2x128x128xf32> to vector<2x128xf32>
    %47 = vector.shape_cast %46 : vector<2x128xf32> to vector<2x1x128xf32>
    %48 = arith.addf %45, %47 : vector<2x1x128xf32>
    %c0_55 = arith.constant 0 : index
    %c0_56 = arith.constant 0 : index
    %c0_57 = arith.constant 0 : index
    %49 = vector.load %arg9[%c0_55, %c0_56, %c0_57] : memref<2x1x128xf32, #tpu.memory_space<vmem>>, vector<2x1x128xf32>
    tpu.vector_store %arg9[%c0_55, %c0_56, %c0_57], %48 {strides = array<i32>} : memref<2x1x128xf32, #tpu.memory_space<vmem>>, vector<2x1x128xf32>,
    %cst_58 = arith.constant dense<0.000000e+00> : vector<2x16x128xf32>
    %50 = tpu.matmul %33, %43, %cst_58 {dimension_numbers = #tpu.dot_dimension_numbers<[2], [1], [1], [2], [0, 0, 0, 1, 1, 2], [0], [0]>} : vector<2x16x128xf32>, vector<2x128x128xf32>, vector<2x16x128xf32> -> vector<2x16x128xf32>
    %c0_59 = arith.constant 0 : index
    %c0_60 = arith.constant 0 : index
    %c0_61 = arith.constant 0 : index
    %51 = vector.load %arg10[%c0_59, %c0_60, %c0_61] : memref<2x16x128xf32, #tpu.memory_space<vmem>>, vector<2x16x128xf32>
    %52 = vector.broadcast %40 : vector<2x1x128xf32> to vector<2x16x128xf32>
    %53 = arith.mulf %52, %51 : vector<2x16x128xf32>
    %54 = arith.addf %53, %50 : vector<2x16x128xf32>
    %c0_62 = arith.constant 0 : index
    %c0_63 = arith.constant 0 : index
    %c0_64 = arith.constant 0 : index
    %55 = vector.load %arg10[%c0_62, %c0_63, %c0_64] : memref<2x16x128xf32, #tpu.memory_space<vmem>>, vector<2x16x128xf32>
    tpu.vector_store %arg10[%c0_62, %c0_63, %c0_64], %54 {strides = array<i32>} : memref<2x16x128xf32, #tpu.memory_space<vmem>>, vector<2x16x128xf32>,
    %c0_65 = arith.constant 0 : index
    %c0_66 = arith.constant 0 : index
    %c0_67 = arith.constant 0 : index
    %56 = vector.load %arg8[%c0_65, %c0_66, %c0_67] : memref<2x1x128xf32, #tpu.memory_space<vmem>>, vector<2x1x128xf32>
    tpu.vector_store %arg8[%c0_65, %c0_66, %c0_67], %38 {strides = array<i32>} : memref<2x1x128xf32, #tpu.memory_space<vmem>>, vector<2x1x128xf32>,
    %c0_68 = arith.constant 0 : index
    %c0_69 = arith.constant 0 : index
    %c0_70 = arith.constant 0 : index
    %57 = vector.load %arg9[%c0_68, %c0_69, %c0_70] : memref<2x1x128xf32, #tpu.memory_space<vmem>>, vector<2x1x128xf32>
    %58 = tpu.reciprocal %57 : vector<2x1x128xf32> -> vector<2x1x128xf32>
    %c0_71 = arith.constant 0 : index
    %59 = memref.load %arg6[%c0_71] : memref<1xf32, #tpu.memory_space<smem>>
    %c0_72 = arith.constant 0 : index
    %c0_73 = arith.constant 0 : index
    %c0_74 = arith.constant 0 : index
    %60 = vector.load %arg10[%c0_72, %c0_73, %c0_74] : memref<2x16x128xf32, #tpu.memory_space<vmem>>, vector<2x16x128xf32>
    %61 = vector.broadcast %59 : f32 to vector<2x1x128xf32>
    %62 = arith.mulf %61, %58 : vector<2x1x128xf32>
    %63 = vector.broadcast %62 : vector<2x1x128xf32> to vector<2x16x128xf32>
    %64 = arith.mulf %60, %63 : vector<2x16x128xf32>
    %c0_75 = arith.constant 0 : index
    %c0_76 = arith.constant 0 : index
    %c0_77 = arith.constant 0 : index
    %65 = vector.load %arg5[%c0_75, %c0_76, %c0_77] : memref<2x16x128xf32, #tpu.memory_space<vmem>>, vector<2x16x128xf32>
    %66 = arith.addf %64, %65 : vector<2x16x128xf32>
    %c0_78 = arith.constant 0 : index
    %c0_79 = arith.constant 0 : index
    %c0_80 = arith.constant 0 : index
    %67 = vector.load %arg7[%c0_78, %c0_79, %c0_80] : memref<2x16x128xf32, #tpu.memory_space<vmem>>, vector<2x16x128xf32>
    tpu.vector_store %arg7[%c0_78, %c0_79, %c0_80], %66 {strides = array<i32>} : memref<2x16x128xf32, #tpu.memory_space<vmem>>, vector<2x16x128xf32>,
    return
  }
  func.func @transform_0(%arg0: i32, %arg1: i32) -> (i32, i32, i32) {
    %c0_i32 = arith.constant 0 : i32
    %c0_i32_0 = arith.constant 0 : i32
    return %arg0, %c0_i32, %arg1 : i32, i32, i32
  }
  func.func @transform_1(%arg0: i32, %arg1: i32) -> (i32, i32, i32) {
    %c0_i32 = arith.constant 0 : i32
    %c0_i32_0 = arith.constant 0 : i32
    %c0_i32_1 = arith.constant 0 : i32
    return %arg0, %c0_i32, %c0_i32_0 : i32, i32, i32
  }
  func.func @transform_2(%arg0: i32, %arg1: i32) -> (i32, i32, i32) {
    %c0_i32 = arith.constant 0 : i32
    %c0_i32_0 = arith.constant 0 : i32
    %c0_i32_1 = arith.constant 0 : i32
    return %arg0, %c0_i32, %c0_i32_0 : i32, i32, i32
  }
  func.func @transform_3(%arg0: i32, %arg1: i32) -> (i32, i32, i32) {
    %c0_i32 = arith.constant 0 : i32
    %c0_i32_0 = arith.constant 0 : i32
    return %arg0, %c0_i32, %arg1 : i32, i32, i32
  }
  func.func @transform_4(%arg0: i32, %arg1: i32) -> i32 {
    %c0_i32 = arith.constant 0 : i32
    %c0_i32_0 = arith.constant 0 : i32
    return %c0_i32 : i32
  }
  func.func @transform_5(%arg0: i32, %arg1: i32) -> (i32, i32, i32) {
    %c0_i32 = arith.constant 0 : i32
    %c0_i32_0 = arith.constant 0 : i32
    return %arg0, %c0_i32, %arg1 : i32, i32, i32
  }
}

</mosaic_0001>

<llo_original>
// kernel: self_attention_forward.2
$region0: #{self_attention_forward.2}
  #allocation0 [shape = 'u32[]', space=smem, size = 0x4, offset = 0x4, fixed_abs, tag = 'smem constant byte address 0x4 - core index']
  #allocation1 [shape = 'u32[72,128]{1,0:T(1,128)}', space=vmem, size = 0x9000, scoped, tag = 'internal scratch']
  %s0 = inlined_call_operand.vmem [shape: f32[2,16,256], index: 0, kind: input, shape index: {}]
  %s1 = inlined_call_operand.vmem [shape: f32[48,16], index: 1, kind: input, shape index: {}]
  %s2 = inlined_call_operand.vmem [shape: f32[48,1], index: 2, kind: input, shape index: {}]
  %s3 = inlined_call_operand.vmem [shape: f32[2,16,256], index: 3, kind: output, shape index: {0}]
  %s4 = inlined_call_operand.vmem [shape: f32[2,16,256], index: 4, kind: output, shape index: {1}]
  %s5 = inlined_call_operand.vmem [shape: f32[2,16,256], index: 5, kind: output, shape index: {2}]
  %6 = xla_tuple %s3, %s4, %s5
  %s7 = sld [smem:[#allocation0]]
  $region61: #{self_attention_forward.2} parent=0
    _
  %s9 = ssub.s32 1, %s7
  %s10 = scalar_select 0, %s9, %s7
  loop: start=0, step=1, limit=4
  $region2: #{self_attention_forward.2} parent=0 // loop_pre_header
    _
  $region3: #{self_attention_forward.2} parent=0 // loop_header
    %s12 = sphi 0, %s16
    %p13 = scmp.ge.s32.totalorder %s12, 4
    %s19 = sphi 0, %s31
    %s20 = sphi 0, %s27
    %s21 = sphi 0, %s19
    %s22 = sphi 0, %s20
    %s23 = sphi 0, %s21
    %s24 = sphi 0, %s22
    %s36 = sphi 0, %s38
    %s39 = sphi 0, %s36
    %s40 = sphi 0, %s39
    %s56 = sphi 0, %s40
    %s60 = sphi 0, %s60
    %s62 = sphi 0, %s60
    %s63 = sphi 0, %s62
    %s77 = sphi 0, %s63
    %s81 = sphi 0, %s81
    %s83 = sphi 0, %s81
    %s84 = sphi 0, %s83
    %s98 = sphi 0, %s84
    %s106 = sphi 0, %s108
    %s109 = sphi 0, %s106
    %s110 = sphi 0, %s109
    %s126 = sphi 0, %s110
    %s134 = sphi 0, %s136
    %s137 = sphi 0, %s134
    %s138 = sphi 0, %s137
    %s154 = sphi 0, %s138
    %s162 = sphi 0, %s164
    %s165 = sphi 0, %s162
    %s166 = sphi 0, %s165
    %s182 = sphi 0, %s166
  $region4: #{self_attention_forward.2} parent=0 // loop_header_branch
    %15 = sbr.rel (%p13) target = $region8
  $region5: #{self_attention_forward.2} parent=0 // loop_body
    %s17 = ssub.s32 %s12, 1
    %s18 = ssub.s32 %s12, 2
    %s25 = sadd.s32 1, %s20
    %p26 = scmp.ge.s32.totalorder %s25, 1
    %s27 = scalar_select %p26, 0, %s25
    %s28 = sadd.s32 1, %s19
    %s29 = scalar_select %p26, %s28, %s19
    %p30 = scmp.ge.s32.totalorder %s29, 2
    %s31 = scalar_select %p30, 0, %s29
    %s32 = ssub.s32 %s19, %s31
    %s33 = ssub.s32 %s20, %s27
    %s34 = sor.u32 %s32, %s33
    %p35 = scmp.eq.s32.totalorder %s34, 0
    %s37 = sadd.s32 %s36, 1
    %s38 = scalar_select %p35, %s36, %s37
    %p41 = pneg %p35
    %p42 = scmp.eq.s32.totalorder %s12, 1
    %p43 = por %p41, %p42
    %p44 = scmp.ne.s32.totalorder %s36, %s39
    %p45 = scmp.eq.s32.totalorder %s12, 0
    %p46 = por %p44, %p45
    %p47 = scmp.ne.s32.totalorder %s36, %s39
    %p48 = scmp.eq.s32.totalorder %s17, 1
    %p49 = por %p47, %p48
    %p50 = scmp.ne.s32.totalorder %s39, %s40
    %p51 = scmp.eq.s32.totalorder %s17, 0
    %p52 = por %p50, %p51
    %p53 = scmp.ne.s32.totalorder %s39, %s40
    %p54 = scmp.eq.s32.totalorder %s18, 1
    %p55 = por %p53, %p54
    %p57 = scmp.ne.s32.totalorder %s40, %s56
    %p58 = scmp.eq.s32.totalorder %s18, 0
    %p59 = por %p57, %p58
    %s61 = sadd.s32 %s60, 1
    %p64 = scmp.eq.s32.totalorder %s12, 1
    %p65 = scmp.ne.s32.totalorder %s60, %s62
    %p66 = scmp.eq.s32.totalorder %s12, 0
    %p67 = por %p65, %p66
    %p68 = scmp.ne.s32.totalorder %s60, %s62
    %p69 = scmp.eq.s32.totalorder %s17, 1
    %p70 = por %p68, %p69
    %p71 = scmp.ne.s32.totalorder %s62, %s63
    %p72 = scmp.eq.s32.totalorder %s17, 0
    %p73 = por %p71, %p72
    %p74 = scmp.ne.s32.totalorder %s62, %s63
    %p75 = scmp.eq.s32.totalorder %s18, 1
    %p76 = por %p74, %p75
    %p78 = scmp.ne.s32.totalorder %s63, %s77
    %p79 = scmp.eq.s32.totalorder %s18, 0
    %p80 = por %p78, %p79
    %s82 = sadd.s32 %s81, 1
    %p85 = scmp.eq.s32.totalorder %s12, 1
    %p86 = scmp.ne.s32.totalorder %s81, %s83
    %p87 = scmp.eq.s32.totalorder %s12, 0
    %p88 = por %p86, %p87
    %p89 = scmp.ne.s32.totalorder %s81, %s83
    %p90 = scmp.eq.s32.totalorder %s17, 1
    %p91 = por %p89, %p90
    %p92 = scmp.ne.s32.totalorder %s83, %s84
    %p93 = scmp.eq.s32.totalorder %s17, 0
    %p94 = por %p92, %p93
    %p95 = scmp.ne.s32.totalorder %s83, %s84
    %p96 = scmp.eq.s32.totalorder %s18, 1
    %p97 = por %p95, %p96
    %p99 = scmp.ne.s32.totalorder %s84, %s98
    %p100 = scmp.eq.s32.totalorder %s18, 0
    %p101 = por %p99, %p100
    %s102 = ssub.s32 %s19, %s31
    %s103 = ssub.s32 %s20, %s27
    %s104 = sor.u32 %s102, %s103
    %p105 = scmp.eq.s32.totalorder %s104, 0
    %s107 = sadd.s32 %s106, 1
    %s108 = scalar_select %p105, %s106, %s107
    %p111 = pneg %p105
    %p112 = scmp.eq.s32.totalorder %s12, 1
    %p113 = por %p111, %p112
    %p114 = scmp.ne.s32.totalorder %s106, %s109
    %p115 = scmp.eq.s32.totalorder %s12, 0
    %p116 = por %p114, %p115
    %p117 = scmp.ne.s32.totalorder %s106, %s109
    %p118 = scmp.eq.s32.totalorder %s17, 1
    %p119 = por %p117, %p118
    %p120 = scmp.ne.s32.totalorder %s109, %s110
    %p121 = scmp.eq.s32.totalorder %s17, 0
    %p122 = por %p120, %p121
    %p123 = scmp.ne.s32.totalorder %s109, %s110
    %p124 = scmp.eq.s32.totalorder %s18, 1
    %p125 = por %p123, %p124
    %p127 = scmp.ne.s32.totalorder %s110, %s126
    %p128 = scmp.eq.s32.totalorder %s18, 0
    %p129 = por %p127, %p128
    %s130 = ssub.s32 %s19, %s31
    %s131 = ssub.s32 %s20, %s27
    %s132 = sor.u32 %s130, %s131
    %p133 = scmp.eq.s32.totalorder %s132, 0
    %s135 = sadd.s32 %s134, 1
    %s136 = scalar_select %p133, %s134, %s135
    %p139 = pneg %p133
    %p140 = scmp.eq.s32.totalorder %s12, 1
    %p141 = por %p139, %p140
    %p142 = scmp.ne.s32.totalorder %s134, %s137
    %p143 = scmp.eq.s32.totalorder %s12, 0
    %p144 = por %p142, %p143
    %p145 = scmp.ne.s32.totalorder %s134, %s137
    %p146 = scmp.eq.s32.totalorder %s17, 1
    %p147 = por %p145, %p146
    %p148 = scmp.ne.s32.totalorder %s137, %s138
    %p149 = scmp.eq.s32.totalorder %s17, 0
    %p150 = por %p148, %p149
    %p151 = scmp.ne.s32.totalorder %s137, %s138
    %p152 = scmp.eq.s32.totalorder %s18, 1
    %p153 = por %p151, %p152
    %p155 = scmp.ne.s32.totalorder %s138, %s154
    %p156 = scmp.eq.s32.totalorder %s18, 0
    %p157 = por %p155, %p156
    %s158 = ssub.s32 %s19, %s31
    %s159 = ssub.s32 %s20, %s27
    %s160 = sor.u32 %s158, %s159
    %p161 = scmp.eq.s32.totalorder %s160, 0
    %s163 = sadd.s32 %s162, 1
    %s164 = scalar_select %p161, %s162, %s163
    %p167 = pneg %p161
    %p168 = scmp.eq.s32.totalorder %s12, 1
    %p169 = por %p167, %p168
    %p170 = scmp.ne.s32.totalorder %s162, %s165
    %p171 = scmp.eq.s32.totalorder %s12, 0
    %p172 = por %p170, %p171
    %p173 = scmp.ne.s32.totalorder %s162, %s165
    %p174 = scmp.eq.s32.totalorder %s17, 1
    %p175 = por %p173, %p174
    %p176 = scmp.ne.s32.totalorder %s165, %s166
    %p177 = scmp.eq.s32.totalorder %s17, 0
    %p178 = por %p176, %p177
    %p179 = scmp.ne.s32.totalorder %s165, %s166
    %p180 = scmp.eq.s32.totalorder %s18, 1
    %p181 = por %p179, %p180
    %p183 = scmp.ne.s32.totalorder %s166, %s182
    %p184 = scmp.eq.s32.totalorder %s18, 0
    %p185 = por %p183, %p184
    %p186 = scmp.le.s32.totalorder 1, %s12
    %p187 = scmp.lt.s32.totalorder %s12, 3
    %p188 = pnand %p186, %p187
    %p189 = pneg %p188
    // Predicated region
    $region9: #{self_attention_forward.2} parent=5 // pred_check
      _
    $region10: #{self_attention_forward.2} parent=5 // pred_check_branch
      %191 = sbr.rel (%p188) target = $region12
    $region11: #{self_attention_forward.2} parent=5 // pred_region
      %s192 = ssub.s32 %s12, 1
      // Predicated region
      $region13: #{self_attention_forward.2} parent=11 // pred_check
        %p193 = pneg %p73
      $region14: #{self_attention_forward.2} parent=11 // pred_check_branch
        %195 = sbr.rel (%p193) target = $region16
      $region15: #{self_attention_forward.2} parent=11 // pred_region
        _
      $region16: #{self_attention_forward.2} parent=11 // pred_fallthru
        _
      // Predicated region
      $region17: #{self_attention_forward.2} parent=11 // pred_check
        %p196 = pneg %p94
      $region18: #{self_attention_forward.2} parent=11 // pred_check_branch
        %198 = sbr.rel (%p196) target = $region20
      $region19: #{self_attention_forward.2} parent=11 // pred_region
        _
      $region20: #{self_attention_forward.2} parent=11 // pred_fallthru
        _
    $region12: #{self_attention_forward.2} parent=5 // pred_fallthru
      _
    %p199 = scmp.lt.s32.totalorder %s12, 2
    // Predicated region
    $region21: #{self_attention_forward.2} parent=5 // pred_check
      %p200 = pneg %p199
    $region22: #{self_attention_forward.2} parent=5 // pred_check_branch
      %202 = sbr.rel (%p200) target = $region24
    $region23: #{self_attention_forward.2} parent=5 // pred_region
      // Predicated region
      $region25: #{self_attention_forward.2} parent=23 // pred_check
        %p203 = pneg %p46
      $region26: #{self_attention_forward.2} parent=23 // pred_check_branch
        %205 = sbr.rel (%p203) target = $region28
      $region27: #{self_attention_forward.2} parent=23 // pred_region
        %s206 = smul.u32 2, %s20
        %p207 = scmp.lt.s32.totalorder %s19, 1
        %s208 = scalar_select %p207, %s19, 1
        %p209 = scmp.lt.s32.totalorder %s206, 1
        %s210 = scalar_select %p209, %s206, 1
        %s211 = smul.addr %s208, 4
        %s212 = sadd.s32 %s210, %s211
        %s213 = smul.addr %s212, 8
        %s214 = scalar_lea.vmem %s0, %s213
        %s215 = smul.u32 2, %s20
      $region28: #{self_attention_forward.2} parent=23 // pred_fallthru
        _
    $region24: #{self_attention_forward.2} parent=5 // pred_fallthru
      _
    %p216 = scmp.le.s32.totalorder 1, %s12
    %p217 = scmp.lt.s32.totalorder %s12, 3
    %p218 = pnand %p216, %p217
    %p219 = pneg %p218
    // Predicated region
    $region29: #{self_attention_forward.2} parent=5 // pred_check
      _
    $region30: #{self_attention_forward.2} parent=5 // pred_check_branch
      %221 = sbr.rel (%p218) target = $region32
    $region31: #{self_attention_forward.2} parent=5 // pred_region
      %s222 = ssub.s32 %s12, 1
      %s223 = smul.u32 2, %s22
      %p224 = scmp.lt.s32.totalorder %s21, 1
      %s225 = scalar_select %p224, %s21, 1
      %p226 = scmp.lt.s32.totalorder %s223, 1
      %s227 = scalar_select %p226, %s223, 1
      %s228 = smul.addr %s225, 4
      %s229 = sadd.s32 %s227, %s228
      %s230 = smul.addr %s229, 8
      %s231 = scalar_lea.vmem %s0, %s230
      %p232 = pneg %p52
      %p233 = pneg %p49
      %p234 = pneg %p73
      %p235 = pneg %p70
      %p236 = pneg %p94
      %p237 = pneg %p91
      %p238 = pneg %p122
      %p239 = pneg %p119
      %s240 = smul.u32 2, %s22
      %p241 = scmp.lt.s32.totalorder %s21, 1
      %s242 = scalar_select %p241, %s21, 1
      %p243 = scmp.lt.s32.totalorder %s240, 1
      %s244 = scalar_select %p243, %s240, 1
      %s245 = smul.addr %s242, 4
      %s246 = sadd.s32 %s244, %s245
      %s247 = smul.addr %s246, 8
      %s248 = scalar_lea.vmem %s3, %s247
      %p249 = pneg %p150
      %p250 = pneg %p147
      %s251 = smul.u32 2, %s22
      %p252 = scmp.lt.s32.totalorder %s21, 1
      %s253 = scalar_select %p252, %s21, 1
      %p254 = scmp.lt.s32.totalorder %s251, 1
      %s255 = scalar_select %p254, %s251, 1
      %s256 = smul.addr %s253, 4
      %s257 = sadd.s32 %s255, %s256
      %s258 = smul.addr %s257, 8
      %s259 = scalar_lea.vmem %s4, %s258
      %p260 = pneg %p178
      %p261 = pneg %p175
      %s262 = smul.u32 2, %s22
      %p263 = scmp.lt.s32.totalorder %s21, 1
      %s264 = scalar_select %p263, %s21, 1
      %p265 = scmp.lt.s32.totalorder %s262, 1
      %s266 = scalar_select %p265, %s262, 1
      %s267 = smul.addr %s264, 4
      %s268 = sadd.s32 %s266, %s267
      %s269 = smul.addr %s268, 8
      %s270 = scalar_lea.vmem %s5, %s269
      %s271 = smul.u32 2, %s22
      %p272 = scmp.lt.s32.totalorder %s21, 1
      %s273 = scalar_select %p272, %s21, 1
      %p274 = scmp.lt.s32.totalorder %s271, 1
      %s275 = scalar_select %p274, %s271, 1
      %s276 = smul.addr %s273, 4
      %s277 = sadd.s32 %s275, %s276
      %s278 = smul.addr %s277, 8
      %s279 = scalar_lea.vmem %s0, %s278
      %s280 = smul.u32 2, %s22
      %s281 = smul.u32 2, %s22
      %p282 = scmp.lt.s32.totalorder %s21, 1
      %s283 = scalar_select %p282, %s21, 1
      %p284 = scmp.lt.s32.totalorder %s281, 1
      %s285 = scalar_select %p284, %s281, 1
      %s286 = smul.addr %s283, 4
      %s287 = sadd.s32 %s285, %s286
      %s288 = smul.addr %s287, 8
      %s289 = scalar_lea.vmem %s3, %s288
      %s290 = smul.u32 2, %s22
      %s291 = smul.u32 2, %s22
      %p292 = scmp.lt.s32.totalorder %s21, 1
      %s293 = scalar_select %p292, %s21, 1
      %p294 = scmp.lt.s32.totalorder %s291, 1
      %s295 = scalar_select %p294, %s291, 1
      %s296 = smul.addr %s293, 4
      %s297 = sadd.s32 %s295, %s296
      %s298 = smul.addr %s297, 8
      %s299 = scalar_lea.vmem %s4, %s298
      %s300 = smul.u32 2, %s22
      %s301 = smul.u32 2, %s22
      %p302 = scmp.lt.s32.totalorder %s21, 1
      %s303 = scalar_select %p302, %s21, 1
      %p304 = scmp.lt.s32.totalorder %s301, 1
      %s305 = scalar_select %p304, %s301, 1
      %s306 = smul.addr %s303, 4
      %s307 = sadd.s32 %s305, %s306
      %s308 = smul.addr %s307, 8
      %s309 = scalar_lea.vmem %s5, %s308
      %s310 = smul.u32 2, %s22
      %v311 = vld [vmem:[%s279] sm:$0xff]
      %v312 = vld [vmem:[%s279 + $0x8] sm:$0xff]
      %v313 = vld [vmem:[%s279 + $0x10] sm:$0xff]
      %v314 = vld [vmem:[%s279 + $0x18] sm:$0xff]
      %v315 = vld [vmem:[%s1] sm:$0xff]
      %v316 = vld [vmem:[%s1 + $0x8] sm:$0xff]
      %v317 = vld [vmem:[%s1 + $0x10] sm:$0xff]
      %v318 = vld [vmem:[%s1 + $0x18] sm:$0xff]
      %v319 = vld [vmem:[%s1 + $0x20] sm:$0xff]
      %v320 = vld [vmem:[%s1 + $0x28] sm:$0xff]
      %v321 = vld [vmem:[%s2] sm:$0xff]
      %v322 = vld [vmem:[%s2 + $0x8] sm:$0xff]
      %v323 = vld [vmem:[%s2 + $0x10] sm:$0xff]
      %v324 = vld [vmem:[%s2 + $0x18] sm:$0xff]
      %v325 = vld [vmem:[%s2 + $0x20] sm:$0xff]
      %v326 = vld [vmem:[%s2 + $0x28] sm:$0xff]
      %328 = vset.pattern.permute.xlu0 0
      %329 = vperm.xlu0 %328, %v321
      %v330 = vpop.permute.xlu0 %329
      %333 = vset.pattern.permute.xlu0 0
      %334 = vperm.xlu0 %333, %v322
      %v335 = vpop.permute.xlu0 %334
      %338 = vset.pattern.permute.xlu0 0
      %339 = vperm.xlu0 %338, %v323
      %v340 = vpop.permute.xlu0 %339
      %343 = vset.pattern.permute.xlu0 0
      %344 = vperm.xlu0 %343, %v324
      %v345 = vpop.permute.xlu0 %344
      %348 = vset.pattern.permute.xlu0 0
      %349 = vperm.xlu0 %348, %v325
      %v350 = vpop.permute.xlu0 %349
      %353 = vset.pattern.permute.xlu0 0
      %354 = vperm.xlu0 %353, %v326
      %v355 = vpop.permute.xlu0 %354
      %vm357 = vcmask 130048
      %v359 = vsel %vm357, %v315, 0
      %v362 = vsel %vm357, %v316, 0
      %v365 = vsel %vm357, %v317, 0
      %v368 = vsel %vm357, %v318, 0
      %v371 = vsel %vm357, %v319, 0
      %v374 = vsel %vm357, %v320, 0
      %376 = vmatpush.msra.mxu0 0.0
      %377 = vmatpush.msra.mxu0 0.0
      %378 = vmatpush.msra.mxu0 0.0
      %379 = vmatpush.msra.mxu0 0.0
      %380 = vmatpush.msra.mxu0 0.0
      %381 = vmatpush.msra.mxu0 0.0
      %382 = vmatpush.msra.mxu0 0.0
      %383 = vmatpush.msra.mxu0 0.0
      %384 = vmatpush.msra.mxu0 0.0
      %385 = vmatpush.msra.mxu0 0.0
      %386 = vmatpush.msra.mxu0 0.0
      %387 = vmatpush.msra.mxu0 0.0
      %388 = vmatpush.msra.mxu0 0.0
      %389 = vmatpush.msra.mxu0 0.0
      %390 = vmatpush.msra.mxu0 %v313
      %391 = vmatpush.msra.mxu0 %v311
      %392 = vmatmul.f32.gmra.mxu0 %v359
      %v393 = vpop.f32.mrf.mxu0
      %v394 = vadd.f32 %v330, %v393
      %395 = vmatmul.f32.gmra.mxu0 %v362
      %v396 = vpop.f32.mrf.mxu0
      %v397 = vadd.f32 %v335, %v396
      %398 = vmatmul.f32.gmra.mxu0 %v365
      %v399 = vpop.f32.mrf.mxu0
      %v400 = vadd.f32 %v340, %v399
      %401 = vmatmul.f32.gmra.mxu0 %v368
      %v402 = vpop.f32.mrf.mxu0
      %v403 = vadd.f32 %v345, %v402
      %404 = vmatmul.f32.gmra.mxu0 %v371
      %v405 = vpop.f32.mrf.mxu0
      %v406 = vadd.f32 %v350, %v405
      %407 = vmatmul.f32.gmra.mxu0 %v374
      %v408 = vpop.f32.mrf.mxu0
      %v409 = vadd.f32 %v355, %v408
      %410 = vdwg.mxu0
      %411 = vmatpush.msra.mxu0 0.0
      %412 = vmatpush.msra.mxu0 0.0
      %413 = vmatpush.msra.mxu0 0.0
      %414 = vmatpush.msra.mxu0 0.0
      %415 = vmatpush.msra.mxu0 0.0
      %416 = vmatpush.msra.mxu0 0.0
      %417 = vmatpush.msra.mxu0 0.0
      %418 = vmatpush.msra.mxu0 0.0
      %419 = vmatpush.msra.mxu0 0.0
      %420 = vmatpush.msra.mxu0 0.0
      %421 = vmatpush.msra.mxu0 0.0
      %422 = vmatpush.msra.mxu0 0.0
      %423 = vmatpush.msra.mxu0 0.0
      %424 = vmatpush.msra.mxu0 0.0
      %425 = vmatpush.msra.mxu0 %v314
      %426 = vmatpush.msra.mxu0 %v312
      %427 = vmatmul.f32.gmra.mxu0 %v359
      %v428 = vpop.f32.mrf.mxu0
      %v429 = vadd.f32 %v330, %v428
      %430 = vmatmul.f32.gmra.mxu0 %v362
      %v431 = vpop.f32.mrf.mxu0
      %v432 = vadd.f32 %v335, %v431
      %433 = vmatmul.f32.gmra.mxu0 %v365
      %v434 = vpop.f32.mrf.mxu0
      %v435 = vadd.f32 %v340, %v434
      %436 = vmatmul.f32.gmra.mxu0 %v368
      %v437 = vpop.f32.mrf.mxu0
      %v438 = vadd.f32 %v345, %v437
      %439 = vmatmul.f32.gmra.mxu0 %v371
      %v440 = vpop.f32.mrf.mxu0
      %v441 = vadd.f32 %v350, %v440
      %442 = vmatmul.f32.gmra.mxu0 %v374
      %v443 = vpop.f32.mrf.mxu0
      %v444 = vadd.f32 %v355, %v443
      %445 = vdwg.mxu0
      %446 = vst [vmem:[%s289] sm:$0xff] %v394
      %447 = vst [vmem:[%s289 + $0x8] sm:$0xff] %v429
      %448 = vst [vmem:[%s289 + $0x10] sm:$0xff] %v397
      %449 = vst [vmem:[%s289 + $0x18] sm:$0xff] %v432
      %450 = vst [vmem:[%s299] sm:$0xff] %v400
      %451 = vst [vmem:[%s299 + $0x8] sm:$0xff] %v435
      %452 = vst [vmem:[%s299 + $0x10] sm:$0xff] %v403
      %453 = vst [vmem:[%s299 + $0x18] sm:$0xff] %v438
      %454 = vst [vmem:[%s309] sm:$0xff] %v406
      %455 = vst [vmem:[%s309 + $0x8] sm:$0xff] %v441
      %456 = vst [vmem:[%s309 + $0x10] sm:$0xff] %v409
      %457 = vst [vmem:[%s309 + $0x18] sm:$0xff] %v444
      %s458 = smul.u32 2, %s22
      %p459 = scmp.lt.s32.totalorder %s21, 1
      %s460 = scalar_select %p459, %s21, 1
      %p461 = scmp.lt.s32.totalorder %s458, 1
      %s462 = scalar_select %p461, %s458, 1
      %s463 = smul.addr %s460, 4
      %s464 = sadd.s32 %s462, %s463
      %s465 = smul.addr %s464, 8
      %s466 = scalar_lea.vmem %s3, %s465
      %s467 = smul.u32 2, %s22
      %p468 = scmp.lt.s32.totalorder %s21, 1
      %s469 = scalar_select %p468, %s21, 1
      %p470 = scmp.lt.s32.totalorder %s467, 1
      %s471 = scalar_select %p470, %s467, 1
      %s472 = smul.addr %s469, 4
      %s473 = sadd.s32 %s471, %s472
      %s474 = smul.addr %s473, 8
      %s475 = scalar_lea.vmem %s4, %s474
      %s476 = smul.u32 2, %s22
      %p477 = scmp.lt.s32.totalorder %s21, 1
      %s478 = scalar_select %p477, %s21, 1
      %p479 = scmp.lt.s32.totalorder %s476, 1
      %s480 = scalar_select %p479, %s476, 1
      %s481 = smul.addr %s478, 4
      %s482 = sadd.s32 %s480, %s481
      %s483 = smul.addr %s482, 8
      %s484 = scalar_lea.vmem %s5, %s483
      // Predicated region
      $region33: #{self_attention_forward.2} parent=31 // pred_check
        %p485 = pneg %p119
      $region34: #{self_attention_forward.2} parent=31 // pred_check_branch
        %487 = sbr.rel (%p485) target = $region36
      $region35: #{self_attention_forward.2} parent=31 // pred_region
        %s488 = smul.u32 2, %s22
      $region36: #{self_attention_forward.2} parent=31 // pred_fallthru
        _
      // Predicated region
      $region37: #{self_attention_forward.2} parent=31 // pred_check
        %p489 = pneg %p147
      $region38: #{self_attention_forward.2} parent=31 // pred_check_branch
        %491 = sbr.rel (%p489) target = $region40
      $region39: #{self_attention_forward.2} parent=31 // pred_region
        %s492 = smul.u32 2, %s22
      $region40: #{self_attention_forward.2} parent=31 // pred_fallthru
        _
      // Predicated region
      $region41: #{self_attention_forward.2} parent=31 // pred_check
        %p493 = pneg %p175
      $region42: #{self_attention_forward.2} parent=31 // pred_check_branch
        %495 = sbr.rel (%p493) target = $region44
      $region43: #{self_attention_forward.2} parent=31 // pred_region
        %s496 = smul.u32 2, %s22
      $region44: #{self_attention_forward.2} parent=31 // pred_fallthru
        _
    $region32: #{self_attention_forward.2} parent=5 // pred_fallthru
      _
    %p497 = scmp.le.s32.totalorder 2, %s12
    // Predicated region
    $region45: #{self_attention_forward.2} parent=5 // pred_check
      %p498 = pneg %p497
    $region46: #{self_attention_forward.2} parent=5 // pred_check_branch
      %500 = sbr.rel (%p498) target = $region48
    $region47: #{self_attention_forward.2} parent=5 // pred_region
      %s501 = ssub.s32 %s12, 2
      // Predicated region
      $region49: #{self_attention_forward.2} parent=47 // pred_check
        %p502 = pneg %p125
      $region50: #{self_attention_forward.2} parent=47 // pred_check_branch
        %504 = sbr.rel (%p502) target = $region52
      $region51: #{self_attention_forward.2} parent=47 // pred_region
        %s505 = smul.u32 2, %s24
        %p506 = scmp.lt.s32.totalorder %s23, 1
        %s507 = scalar_select %p506, %s23, 1
        %p508 = scmp.lt.s32.totalorder %s505, 1
        %s509 = scalar_select %p508, %s505, 1
        %s510 = smul.addr %s507, 4
        %s511 = sadd.s32 %s509, %s510
        %s512 = smul.addr %s511, 8
        %s513 = scalar_lea.vmem %s3, %s512
      $region52: #{self_attention_forward.2} parent=47 // pred_fallthru
        _
      // Predicated region
      $region53: #{self_attention_forward.2} parent=47 // pred_check
        %p514 = pneg %p153
      $region54: #{self_attention_forward.2} parent=47 // pred_check_branch
        %516 = sbr.rel (%p514) target = $region56
      $region55: #{self_attention_forward.2} parent=47 // pred_region
        %s517 = smul.u32 2, %s24
        %p518 = scmp.lt.s32.totalorder %s23, 1
        %s519 = scalar_select %p518, %s23, 1
        %p520 = scmp.lt.s32.totalorder %s517, 1
        %s521 = scalar_select %p520, %s517, 1
        %s522 = smul.addr %s519, 4
        %s523 = sadd.s32 %s521, %s522
        %s524 = smul.addr %s523, 8
        %s525 = scalar_lea.vmem %s4, %s524
      $region56: #{self_attention_forward.2} parent=47 // pred_fallthru
        _
      // Predicated region
      $region57: #{self_attention_forward.2} parent=47 // pred_check
        %p526 = pneg %p181
      $region58: #{self_attention_forward.2} parent=47 // pred_check_branch
        %528 = sbr.rel (%p526) target = $region60
      $region59: #{self_attention_forward.2} parent=47 // pred_region
        %s529 = smul.u32 2, %s24
        %p530 = scmp.lt.s32.totalorder %s23, 1
        %s531 = scalar_select %p530, %s23, 1
        %p532 = scmp.lt.s32.totalorder %s529, 1
        %s533 = scalar_select %p532, %s529, 1
        %s534 = smul.addr %s531, 4
        %s535 = sadd.s32 %s533, %s534
        %s536 = smul.addr %s535, 8
        %s537 = scalar_lea.vmem %s5, %s536
      $region60: #{self_attention_forward.2} parent=47 // pred_fallthru
        _
    $region48: #{self_attention_forward.2} parent=5 // pred_fallthru
      _
  $region6: #{self_attention_forward.2} parent=0 // loop_footer
    %s16 = sadd.s32 1, %s12
  $region7: #{self_attention_forward.2} parent=0 // loop_footer_branch
    %11 = sbr.rel target = $region3
  $region8: #{self_attention_forward.2} parent=0 // loop_exit
    _

// kernel: self_attention_forward.3
$region0: #{self_attention_forward.3}
  #allocation0 [shape = 'u32[]', space=smem, size = 0x4, offset = 0x4, fixed_abs, tag = 'smem constant byte address 0x4 - core index']
  #allocation1 [shape = 'u32[72,128]{1,0:T(1,128)}', space=vmem, size = 0x9000, scoped, tag = 'internal scratch']
  #allocation2 [shape = 'f32[2,1,128]{2,1,0:T(1,128)}', space=vmem, size = 0x400, scoped, tag = 'scratch operand']
  #allocation3 [shape = 'f32[2,1,128]{2,1,0:T(1,128)}', space=vmem, size = 0x400, scoped, tag = 'scratch operand']
  #allocation4 [shape = 'f32[2,16,128]{2,1,0:T(8,128)}', space=vmem, size = 0x4000, scoped, tag = 'scratch operand']
  #allocation5 [shape = 'f32[1]{0:T(128)S(6)}', space=smem, size = 0x200, scoped, tag = 'scoped memory for self_attention_forward.3']
  %s0 = inlined_call_operand.vmem [shape: f32[2,16,256], index: 0, kind: input, shape index: {}]
  %s1 = inlined_call_operand.vmem [shape: f32[2,16,256], index: 1, kind: input, shape index: {}]
  %s2 = inlined_call_operand.vmem [shape: f32[2,16,256], index: 2, kind: input, shape index: {}]
  %s3 = inlined_call_operand.vmem [shape: f32[2,16,256], index: 3, kind: input, shape index: {}]
  %s4 = inlined_call_operand.<no memory space> [shape: f32[1], index: 4, kind: input, shape index: {}]
  %s5 = inlined_call_operand.vmem [shape: f32[2,16,256], index: 5, kind: output, shape index: {}]
  %s6 = sld [smem:[#allocation0]]
  $region163: #{self_attention_forward.3} parent=0
    _
  %s8 = ssub.s32 1, %s6
  %s9 = scalar_select 0, %s8, %s6
  %10 = sst [smem:[#allocation5]] %s4
  $region1: #{self_attention_forward.3} parent=0
    #allocation6 [shape = 'u8[32768]{0}', space=vmem, size = 0x8000, scoped, tag = 'input window, operand 0']
    #allocation7 [shape = 'u8[32768]{0}', space=vmem, size = 0x8000, scoped, tag = 'input window, operand 3']
    #allocation8 [shape = 'u8[32768]{0}', space=vmem, size = 0x8000, scoped, tag = 'output window, operand 0']
    loop: start=0, step=1, limit=4
    $region2: #{self_attention_forward.3} parent=1 // loop_pre_header
      _
    $region3: #{self_attention_forward.3} parent=1 // loop_header
      %s12 = sphi 0, %s16
      %p13 = scmp.ge.s32.totalorder %s12, 4
      %s19 = sphi 0, %s31
      %s20 = sphi 0, %s27
      %s21 = sphi 0, %s19
      %s22 = sphi 0, %s20
      %s23 = sphi 0, %s21
      %s24 = sphi 0, %s22
      %s36 = sphi 0, %s38
      %s39 = sphi 0, %s36
      %s40 = sphi 0, %s39
      %s56 = sphi 0, %s40
      %s62 = sphi 0, %s64
      %s65 = sphi 0, %s62
      %s66 = sphi 0, %s65
      %s82 = sphi 0, %s66
      %s88 = sphi 0, %s90
      %s91 = sphi 0, %s88
      %s92 = sphi 0, %s91
      %s108 = sphi 0, %s92
      %s116 = sphi 0, %s118
      %s119 = sphi 0, %s116
      %s120 = sphi 0, %s119
      %s136 = sphi 0, %s120
      %s140 = sphi 0, %s140
      %s142 = sphi 0, %s140
      %s143 = sphi 0, %s142
      %s157 = sphi 0, %s143
      %s165 = sphi 0, %s167
      %s168 = sphi 0, %s165
      %s169 = sphi 0, %s168
      %s185 = sphi 0, %s169
    $region4: #{self_attention_forward.3} parent=1 // loop_header_branch
      %15 = sbr.rel (%p13) target = $region8
    $region5: #{self_attention_forward.3} parent=1 // loop_body
      %s17 = ssub.s32 %s12, 1
      %s18 = ssub.s32 %s12, 2
      %s25 = sadd.s32 1, %s20
      %p26 = scmp.ge.s32.totalorder %s25, 2
      %s27 = scalar_select %p26, 0, %s25
      %s28 = sadd.s32 1, %s19
      %s29 = scalar_select %p26, %s28, %s19
      %p30 = scmp.ge.s32.totalorder %s29, 1
      %s31 = scalar_select %p30, 0, %s29
      %s32 = ssub.s32 %s19, %s31
      %s33 = ssub.s32 %s20, %s27
      %s34 = sor.u32 %s32, %s33
      %p35 = scmp.eq.s32.totalorder %s34, 0
      %s37 = sadd.s32 %s36, 1
      %s38 = scalar_select %p35, %s36, %s37
      %p41 = pneg %p35
      %p42 = scmp.eq.s32.totalorder %s12, 1
      %p43 = por %p41, %p42
      %p44 = scmp.ne.s32.totalorder %s36, %s39
      %p45 = scmp.eq.s32.totalorder %s12, 0
      %p46 = por %p44, %p45
      %p47 = scmp.ne.s32.totalorder %s36, %s39
      %p48 = scmp.eq.s32.totalorder %s17, 1
      %p49 = por %p47, %p48
      %p50 = scmp.ne.s32.totalorder %s39, %s40
      %p51 = scmp.eq.s32.totalorder %s17, 0
      %p52 = por %p50, %p51
      %p53 = scmp.ne.s32.totalorder %s39, %s40
      %p54 = scmp.eq.s32.totalorder %s18, 1
      %p55 = por %p53, %p54
      %p57 = scmp.ne.s32.totalorder %s40, %s56
      %p58 = scmp.eq.s32.totalorder %s18, 0
      %p59 = por %p57, %p58
      %s60 = ssub.s32 %s19, %s31
      %p61 = scmp.eq.s32.totalorder %s60, 0
      %s63 = sadd.s32 %s62, 1
      %s64 = scalar_select %p61, %s62, %s63
      %p67 = pneg %p61
      %p68 = scmp.eq.s32.totalorder %s12, 1
      %p69 = por %p67, %p68
      %p70 = scmp.ne.s32.totalorder %s62, %s65
      %p71 = scmp.eq.s32.totalorder %s12, 0
      %p72 = por %p70, %p71
      %p73 = scmp.ne.s32.totalorder %s62, %s65
      %p74 = scmp.eq.s32.totalorder %s17, 1
      %p75 = por %p73, %p74
      %p76 = scmp.ne.s32.totalorder %s65, %s66
      %p77 = scmp.eq.s32.totalorder %s17, 0
      %p78 = por %p76, %p77
      %p79 = scmp.ne.s32.totalorder %s65, %s66
      %p80 = scmp.eq.s32.totalorder %s18, 1
      %p81 = por %p79, %p80
      %p83 = scmp.ne.s32.totalorder %s66, %s82
      %p84 = scmp.eq.s32.totalorder %s18, 0
      %p85 = por %p83, %p84
      %s86 = ssub.s32 %s19, %s31
      %p87 = scmp.eq.s32.totalorder %s86, 0
      %s89 = sadd.s32 %s88, 1
      %s90 = scalar_select %p87, %s88, %s89
      %p93 = pneg %p87
      %p94 = scmp.eq.s32.totalorder %s12, 1
      %p95 = por %p93, %p94
      %p96 = scmp.ne.s32.totalorder %s88, %s91
      %p97 = scmp.eq.s32.totalorder %s12, 0
      %p98 = por %p96, %p97
      %p99 = scmp.ne.s32.totalorder %s88, %s91
      %p100 = scmp.eq.s32.totalorder %s17, 1
      %p101 = por %p99, %p100
      %p102 = scmp.ne.s32.totalorder %s91, %s92
      %p103 = scmp.eq.s32.totalorder %s17, 0
      %p104 = por %p102, %p103
      %p105 = scmp.ne.s32.totalorder %s91, %s92
      %p106 = scmp.eq.s32.totalorder %s18, 1
      %p107 = por %p105, %p106
      %p109 = scmp.ne.s32.totalorder %s92, %s108
      %p110 = scmp.eq.s32.totalorder %s18, 0
      %p111 = por %p109, %p110
      %s112 = ssub.s32 %s19, %s31
      %s113 = ssub.s32 %s20, %s27
      %s114 = sor.u32 %s112, %s113
      %p115 = scmp.eq.s32.totalorder %s114, 0
      %s117 = sadd.s32 %s116, 1
      %s118 = scalar_select %p115, %s116, %s117
      %p121 = pneg %p115
      %p122 = scmp.eq.s32.totalorder %s12, 1
      %p123 = por %p121, %p122
      %p124 = scmp.ne.s32.totalorder %s116, %s119
      %p125 = scmp.eq.s32.totalorder %s12, 0
      %p126 = por %p124, %p125
      %p127 = scmp.ne.s32.totalorder %s116, %s119
      %p128 = scmp.eq.s32.totalorder %s17, 1
      %p129 = por %p127, %p128
      %p130 = scmp.ne.s32.totalorder %s119, %s120
      %p131 = scmp.eq.s32.totalorder %s17, 0
      %p132 = por %p130, %p131
      %p133 = scmp.ne.s32.totalorder %s119, %s120
      %p134 = scmp.eq.s32.totalorder %s18, 1
      %p135 = por %p133, %p134
      %p137 = scmp.ne.s32.totalorder %s120, %s136
      %p138 = scmp.eq.s32.totalorder %s18, 0
      %p139 = por %p137, %p138
      %s141 = sadd.s32 %s140, 1
      %p144 = scmp.eq.s32.totalorder %s12, 1
      %p145 = scmp.ne.s32.totalorder %s140, %s142
      %p146 = scmp.eq.s32.totalorder %s12, 0
      %p147 = por %p145, %p146
      %p148 = scmp.ne.s32.totalorder %s140, %s142
      %p149 = scmp.eq.s32.totalorder %s17, 1
      %p150 = por %p148, %p149
      %p151 = scmp.ne.s32.totalorder %s142, %s143
      %p152 = scmp.eq.s32.totalorder %s17, 0
      %p153 = por %p151, %p152
      %p154 = scmp.ne.s32.totalorder %s142, %s143
      %p155 = scmp.eq.s32.totalorder %s18, 1
      %p156 = por %p154, %p155
      %p158 = scmp.ne.s32.totalorder %s143, %s157
      %p159 = scmp.eq.s32.totalorder %s18, 0
      %p160 = por %p158, %p159
      %s161 = ssub.s32 %s19, %s31
      %s162 = ssub.s32 %s20, %s27
      %s163 = sor.u32 %s161, %s162
      %p164 = scmp.eq.s32.totalorder %s163, 0
      %s166 = sadd.s32 %s165, 1
      %s167 = scalar_select %p164, %s165, %s166
      %p170 = pneg %p164
      %p171 = scmp.eq.s32.totalorder %s12, 1
      %p172 = por %p170, %p171
      %p173 = scmp.ne.s32.totalorder %s165, %s168
      %p174 = scmp.eq.s32.totalorder %s12, 0
      %p175 = por %p173, %p174
      %p176 = scmp.ne.s32.totalorder %s165, %s168
      %p177 = scmp.eq.s32.totalorder %s17, 1
      %p178 = por %p176, %p177
      %p179 = scmp.ne.s32.totalorder %s168, %s169
      %p180 = scmp.eq.s32.totalorder %s17, 0
      %p181 = por %p179, %p180
      %p182 = scmp.ne.s32.totalorder %s168, %s169
      %p183 = scmp.eq.s32.totalorder %s18, 1
      %p184 = por %p182, %p183
      %p186 = scmp.ne.s32.totalorder %s169, %s185
      %p187 = scmp.eq.s32.totalorder %s18, 0
      %p188 = por %p186, %p187
      %p189 = scmp.le.s32.totalorder 1, %s12
      %p190 = scmp.lt.s32.totalorder %s12, 3
      %p191 = pnand %p189, %p190
      %p192 = pneg %p191
      // Predicated region
      $region9: #{self_attention_forward.3} parent=5 // pred_check
        _
      $region10: #{self_attention_forward.3} parent=5 // pred_check_branch
        %194 = sbr.rel (%p191) target = $region12
      $region11: #{self_attention_forward.3} parent=5 // pred_region
        %s195 = ssub.s32 %s12, 1
        // Predicated region
        $region13: #{self_attention_forward.3} parent=11 // pred_check
          %p196 = pneg %p78
        $region14: #{self_attention_forward.3} parent=11 // pred_check_branch
          %198 = sbr.rel (%p196) target = $region16
        $region15: #{self_attention_forward.3} parent=11 // pred_region
          %s199 = smul.u32 2, %s21
          %p200 = scmp.lt.s32.totalorder %s199, 1
          %s201 = scalar_select %p200, %s199, 1
          %s202 = smul.addr %s201, 4
          %s203 = smul.addr %s202, 8
          %s204 = scalar_lea.vmem %s1, %s203
          %s205 = smul.u32 2, %s21
        $region16: #{self_attention_forward.3} parent=11 // pred_fallthru
          _
        // Predicated region
        $region17: #{self_attention_forward.3} parent=11 // pred_check
          %p206 = pneg %p104
        $region18: #{self_attention_forward.3} parent=11 // pred_check_branch
          %208 = sbr.rel (%p206) target = $region20
        $region19: #{self_attention_forward.3} parent=11 // pred_region
          %s209 = smul.u32 2, %s21
          %p210 = scmp.lt.s32.totalorder %s209, 1
          %s211 = scalar_select %p210, %s209, 1
          %s212 = smul.addr %s211, 4
          %s213 = smul.addr %s212, 8
          %s214 = scalar_lea.vmem %s2, %s213
          %s215 = smul.u32 2, %s21
        $region20: #{self_attention_forward.3} parent=11 // pred_fallthru
          _
        // Predicated region
        $region21: #{self_attention_forward.3} parent=11 // pred_check
          %p216 = pneg %p153
        $region22: #{self_attention_forward.3} parent=11 // pred_check_branch
          %218 = sbr.rel (%p216) target = $region24
        $region23: #{self_attention_forward.3} parent=11 // pred_region
          _
        $region24: #{self_attention_forward.3} parent=11 // pred_fallthru
          _
      $region12: #{self_attention_forward.3} parent=5 // pred_fallthru
        _
      %p219 = scmp.lt.s32.totalorder %s12, 2
      // Predicated region
      $region25: #{self_attention_forward.3} parent=5 // pred_check
        %p220 = pneg %p219
      $region26: #{self_attention_forward.3} parent=5 // pred_check_branch
        %222 = sbr.rel (%p220) target = $region28
      $region27: #{self_attention_forward.3} parent=5 // pred_region
        // Predicated region
        $region29: #{self_attention_forward.3} parent=27 // pred_check
          %p223 = pneg %p46
        $region30: #{self_attention_forward.3} parent=27 // pred_check_branch
          %225 = sbr.rel (%p223) target = $region32
        $region31: #{self_attention_forward.3} parent=27 // pred_region
          %s226 = sand.u32 %s36, 1
          %s227 = sand.u32 %s36, 1
          %s228 = smul.addr %s227, 32
          %s229 = scalar_lea.vmem [#allocation6], %s228
          %s230 = smul.u32 2, %s19
          %s231 = smul.addr %s230, 4
          %s232 = sadd.s32 %s20, %s231
          %s233 = smul.addr %s232, 8
          %s234 = scalar_lea.vmem %s0, %s233
          // Predicated region
          $region33: #{self_attention_forward.3} parent=31 // pred_check
            _
          $region34: #{self_attention_forward.3} parent=31 // pred_check_branch
            %236 = sbr.rel (0) target = $region36
          $region35: #{self_attention_forward.3} parent=31 // pred_region
            // Predicated region
            $region37: #{self_attention_forward.3} parent=35 // pred_check
              _
            $region38: #{self_attention_forward.3} parent=35 // pred_check_branch
              %238 = sbr.rel (0) target = $region40
            $region39: #{self_attention_forward.3} parent=35 // pred_region
              // Predicated region
              $region52: #{self_attention_forward.3} parent=39 // pred_check
                _
              $region53: #{self_attention_forward.3} parent=39 // pred_check_branch
                %260 = sbr.rel (0) target = $region55
              $region54: #{self_attention_forward.3} parent=39 // pred_region
                loop: start=0, step=1, limit=1
                $region56: #{self_attention_forward.3} parent=54 // loop_pre_header
                  _
                $region57: #{self_attention_forward.3} parent=54 // loop_header
                  %s262 = sphi 0, %s266
                  %p263 = scmp.ge.s32.totalorder %s262, 1
                  %s267 = sphi %s234, %s234
                  %s268 = sphi %s229, %s229
                $region58: #{self_attention_forward.3} parent=54 // loop_header_branch
                  %265 = sbr.rel (%p263) target = $region62
                $region59: #{self_attention_forward.3} parent=54 // loop_body
                  %v269 = vld [vmem:[%s267] sm:$0xff]
                  %270 = vst [vmem:[%s268] sm:$0xff] %v269
                  %v271 = vld [vmem:[%s267 + $0x10] sm:$0xff]
                  %272 = vst [vmem:[%s268 + $0x8] sm:$0xff] %v271
                  %v273 = vld [vmem:[%s267 + $0x20] sm:$0xff]
                  %274 = vst [vmem:[%s268 + $0x10] sm:$0xff] %v273
                  %v275 = vld [vmem:[%s267 + $0x30] sm:$0xff]
                  %276 = vst [vmem:[%s268 + $0x18] sm:$0xff] %v275
                $region60: #{self_attention_forward.3} parent=54 // loop_footer
                  %s266 = sadd.s32 1, %s262
                $region61: #{self_attention_forward.3} parent=54 // loop_footer_branch
                  %261 = sbr.rel target = $region57
                $region62: #{self_attention_forward.3} parent=54 // loop_exit
                  _
              $region55: #{self_attention_forward.3} parent=39 // pred_fallthru
                _
              // Predicated region
              $region63: #{self_attention_forward.3} parent=39 // pred_check
                _
              $region64: #{self_attention_forward.3} parent=39 // pred_check_branch
                %278 = sbr.rel target = $region66
              $region65: #{self_attention_forward.3} parent=39 // pred_region
                _
              $region66: #{self_attention_forward.3} parent=39 // pred_fallthru
                _
            $region40: #{self_attention_forward.3} parent=35 // pred_fallthru
              _
            // Predicated region
            $region41: #{self_attention_forward.3} parent=35 // pred_check
              _
            $region42: #{self_attention_forward.3} parent=35 // pred_check_branch
              %240 = sbr.rel target = $region44
            $region43: #{self_attention_forward.3} parent=35 // pred_region
              %s242 = ssub.s32 256, 1
              loop: start=0, step=1, limit=1
              $region45: #{self_attention_forward.3} parent=43 // loop_pre_header
                _
              $region46: #{self_attention_forward.3} parent=43 // loop_header
                %s244 = sphi 0, %s248
                %p245 = scmp.ge.s32.totalorder %s244, 1
                %s249 = sphi %s234, %s234
                %s250 = sphi %s229, %s229
              $region47: #{self_attention_forward.3} parent=43 // loop_header_branch
                %247 = sbr.rel (%p245) target = $region51
              $region48: #{self_attention_forward.3} parent=43 // loop_body
                %v251 = vld [vmem:[%s249] sm:%s242]
                %252 = vst [vmem:[%s250] sm:%s242] %v251
                %v253 = vld [vmem:[%s249 + $0x10] sm:%s242]
                %254 = vst [vmem:[%s250 + $0x8] sm:%s242] %v253
                %v255 = vld [vmem:[%s249 + $0x20] sm:%s242]
                %256 = vst [vmem:[%s250 + $0x10] sm:%s242] %v255
                %v257 = vld [vmem:[%s249 + $0x30] sm:%s242]
                %258 = vst [vmem:[%s250 + $0x18] sm:%s242] %v257
              $region49: #{self_attention_forward.3} parent=43 // loop_footer
                %s248 = sadd.s32 1, %s244
              $region50: #{self_attention_forward.3} parent=43 // loop_footer_branch
                %243 = sbr.rel target = $region46
              $region51: #{self_attention_forward.3} parent=43 // loop_exit
                _
            $region44: #{self_attention_forward.3} parent=35 // pred_fallthru
              _
          $region36: #{self_attention_forward.3} parent=31 // pred_fallthru
            _
          %279 = vnop
        $region32: #{self_attention_forward.3} parent=27 // pred_fallthru
          _
        // Predicated region
        $region67: #{self_attention_forward.3} parent=27 // pred_check
          %p280 = pneg %p126
        $region68: #{self_attention_forward.3} parent=27 // pred_check_branch
          %282 = sbr.rel (%p280) target = $region70
        $region69: #{self_attention_forward.3} parent=27 // pred_region
          %s283 = sand.u32 %s116, 1
          %s284 = sand.u32 %s116, 1
          %s285 = smul.addr %s284, 32
          %s286 = scalar_lea.vmem [#allocation7], %s285
          %s287 = smul.u32 2, %s19
          %s288 = smul.addr %s287, 4
          %s289 = sadd.s32 %s20, %s288
          %s290 = smul.addr %s289, 8
          %s291 = scalar_lea.vmem %s3, %s290
          // Predicated region
          $region71: #{self_attention_forward.3} parent=69 // pred_check
            _
          $region72: #{self_attention_forward.3} parent=69 // pred_check_branch
            %293 = sbr.rel (0) target = $region74
          $region73: #{self_attention_forward.3} parent=69 // pred_region
            // Predicated region
            $region75: #{self_attention_forward.3} parent=73 // pred_check
              _
            $region76: #{self_attention_forward.3} parent=73 // pred_check_branch
              %295 = sbr.rel (0) target = $region78
            $region77: #{self_attention_forward.3} parent=73 // pred_region
              // Predicated region
              $region90: #{self_attention_forward.3} parent=77 // pred_check
                _
              $region91: #{self_attention_forward.3} parent=77 // pred_check_branch
                %317 = sbr.rel (0) target = $region93
              $region92: #{self_attention_forward.3} parent=77 // pred_region
                loop: start=0, step=1, limit=1
                $region94: #{self_attention_forward.3} parent=92 // loop_pre_header
                  _
                $region95: #{self_attention_forward.3} parent=92 // loop_header
                  %s319 = sphi 0, %s323
                  %p320 = scmp.ge.s32.totalorder %s319, 1
                  %s324 = sphi %s291, %s291
                  %s325 = sphi %s286, %s286
                $region96: #{self_attention_forward.3} parent=92 // loop_header_branch
                  %322 = sbr.rel (%p320) target = $region100
                $region97: #{self_attention_forward.3} parent=92 // loop_body
                  %v326 = vld [vmem:[%s324] sm:$0xff]
                  %327 = vst [vmem:[%s325] sm:$0xff] %v326
                  %v328 = vld [vmem:[%s324 + $0x10] sm:$0xff]
                  %329 = vst [vmem:[%s325 + $0x8] sm:$0xff] %v328
                  %v330 = vld [vmem:[%s324 + $0x20] sm:$0xff]
                  %331 = vst [vmem:[%s325 + $0x10] sm:$0xff] %v330
                  %v332 = vld [vmem:[%s324 + $0x30] sm:$0xff]
                  %333 = vst [vmem:[%s325 + $0x18] sm:$0xff] %v332
                $region98: #{self_attention_forward.3} parent=92 // loop_footer
                  %s323 = sadd.s32 1, %s319
                $region99: #{self_attention_forward.3} parent=92 // loop_footer_branch
                  %318 = sbr.rel target = $region95
                $region100: #{self_attention_forward.3} parent=92 // loop_exit
                  _
              $region93: #{self_attention_forward.3} parent=77 // pred_fallthru
                _
              // Predicated region
              $region101: #{self_attention_forward.3} parent=77 // pred_check
                _
              $region102: #{self_attention_forward.3} parent=77 // pred_check_branch
                %335 = sbr.rel target = $region104
              $region103: #{self_attention_forward.3} parent=77 // pred_region
                _
              $region104: #{self_attention_forward.3} parent=77 // pred_fallthru
                _
            $region78: #{self_attention_forward.3} parent=73 // pred_fallthru
              _
            // Predicated region
            $region79: #{self_attention_forward.3} parent=73 // pred_check
              _
            $region80: #{self_attention_forward.3} parent=73 // pred_check_branch
              %297 = sbr.rel target = $region82
            $region81: #{self_attention_forward.3} parent=73 // pred_region
              %s299 = ssub.s32 256, 1
              loop: start=0, step=1, limit=1
              $region83: #{self_attention_forward.3} parent=81 // loop_pre_header
                _
              $region84: #{self_attention_forward.3} parent=81 // loop_header
                %s301 = sphi 0, %s305
                %p302 = scmp.ge.s32.totalorder %s301, 1
                %s306 = sphi %s291, %s291
                %s307 = sphi %s286, %s286
              $region85: #{self_attention_forward.3} parent=81 // loop_header_branch
                %304 = sbr.rel (%p302) target = $region89
              $region86: #{self_attention_forward.3} parent=81 // loop_body
                %v308 = vld [vmem:[%s306] sm:%s299]
                %309 = vst [vmem:[%s307] sm:%s299] %v308
                %v310 = vld [vmem:[%s306 + $0x10] sm:%s299]
                %311 = vst [vmem:[%s307 + $0x8] sm:%s299] %v310
                %v312 = vld [vmem:[%s306 + $0x20] sm:%s299]
                %313 = vst [vmem:[%s307 + $0x10] sm:%s299] %v312
                %v314 = vld [vmem:[%s306 + $0x30] sm:%s299]
                %315 = vst [vmem:[%s307 + $0x18] sm:%s299] %v314
              $region87: #{self_attention_forward.3} parent=81 // loop_footer
                %s305 = sadd.s32 1, %s301
              $region88: #{self_attention_forward.3} parent=81 // loop_footer_branch
                %300 = sbr.rel target = $region84
              $region89: #{self_attention_forward.3} parent=81 // loop_exit
                _
            $region82: #{self_attention_forward.3} parent=73 // pred_fallthru
              _
          $region74: #{self_attention_forward.3} parent=69 // pred_fallthru
            _
          %336 = vnop
        $region70: #{self_attention_forward.3} parent=27 // pred_fallthru
          _
      $region28: #{self_attention_forward.3} parent=5 // pred_fallthru
        _
      %p337 = scmp.le.s32.totalorder 1, %s12
      %p338 = scmp.lt.s32.totalorder %s12, 3
      %p339 = pnand %p337, %p338
      %p340 = pneg %p339
      // Predicated region
      $region105: #{self_attention_forward.3} parent=5 // pred_check
        _
      $region106: #{self_attention_forward.3} parent=5 // pred_check_branch
        %342 = sbr.rel (%p339) target = $region108
      $region107: #{self_attention_forward.3} parent=5 // pred_region
        %s343 = ssub.s32 %s12, 1
        %s344 = sand.u32 %s39, 1
        %s345 = sand.u32 %s39, 1
        %s346 = smul.addr %s345, 32
        %s347 = scalar_lea.vmem [#allocation6], %s346
        // Predicated region
        $region109: #{self_attention_forward.3} parent=107 // pred_check
          %p348 = pneg %p52
        $region110: #{self_attention_forward.3} parent=107 // pred_check_branch
          %350 = sbr.rel (%p348) target = $region112
        $region111: #{self_attention_forward.3} parent=107 // pred_region
          _
        $region112: #{self_attention_forward.3} parent=107 // pred_fallthru
          _
        %s351 = sand.u32 %s119, 1
        %s352 = sand.u32 %s119, 1
        %s353 = smul.addr %s352, 32
        %s354 = scalar_lea.vmem [#allocation7], %s353
        // Predicated region
        $region113: #{self_attention_forward.3} parent=107 // pred_check
          %p355 = pneg %p132
        $region114: #{self_attention_forward.3} parent=107 // pred_check_branch
          %357 = sbr.rel (%p355) target = $region116
        $region115: #{self_attention_forward.3} parent=107 // pred_region
          _
        $region116: #{self_attention_forward.3} parent=107 // pred_fallthru
          _
        %s358 = sand.u32 %s39, 1
        %s359 = sand.u32 %s39, 1
        %s360 = smul.addr %s359, 32
        %s361 = scalar_lea.vmem [#allocation6], %s360
        %p362 = pneg %p52
        %p363 = pneg %p49
        %s364 = smul.u32 2, %s21
        %p365 = scmp.lt.s32.totalorder %s364, 1
        %s366 = scalar_select %p365, %s364, 1
        %s367 = smul.addr %s366, 4
        %s368 = smul.addr %s367, 8
        %s369 = scalar_lea.vmem %s1, %s368
        %p370 = pneg %p78
        %p371 = pneg %p75
        %s372 = smul.u32 2, %s21
        %p373 = scmp.lt.s32.totalorder %s372, 1
        %s374 = scalar_select %p373, %s372, 1
        %s375 = smul.addr %s374, 4
        %s376 = smul.addr %s375, 8
        %s377 = scalar_lea.vmem %s2, %s376
        %p378 = pneg %p104
        %p379 = pneg %p101
        %s380 = sand.u32 %s119, 1
        %s381 = sand.u32 %s119, 1
        %s382 = smul.addr %s381, 32
        %s383 = scalar_lea.vmem [#allocation7], %s382
        %p384 = pneg %p132
        %p385 = pneg %p129
        %p386 = pneg %p153
        %p387 = pneg %p150
        %p388 = pneg %p181
        %p389 = pneg %p178
        %s390 = sand.u32 %s168, 1
        %s391 = sand.u32 %s168, 1
        %s392 = smul.addr %s391, 32
        %s393 = scalar_lea.vmem [#allocation8], %s392
        %s394 = smul.u32 2, %s21
        %s395 = smul.u32 2, %s21
        %p396 = scmp.lt.s32.totalorder %s395, 1
        %s397 = scalar_select %p396, %s395, 1
        %s398 = smul.addr %s397, 4
        %s399 = smul.addr %s398, 8
        %s400 = scalar_lea.vmem %s1, %s399
        %s401 = smul.u32 2, %s21
        %s402 = smul.u32 2, %s21
        %p403 = scmp.lt.s32.totalorder %s402, 1
        %s404 = scalar_select %p403, %s402, 1
        %s405 = smul.addr %s404, 4
        %s406 = smul.addr %s405, 8
        %s407 = scalar_lea.vmem %s2, %s406
        %s408 = smul.u32 2, %s21
        %s409 = smul.u32 2, %s21
        %s410 = smul.u32 2, %s21
        %411 = vst [vmem:[#allocation2] sm:$0x1] -inf
        %412 = vst [vmem:[#allocation2 + $0x1] sm:$0x1] -inf
        %413 = vst [vmem:[#allocation3] sm:$0x1] 0.0
        %414 = vst [vmem:[#allocation3 + $0x1] sm:$0x1] 0.0
        %415 = vst [vmem:[#allocation4] sm:$0xff] 0.0
        %416 = vst [vmem:[#allocation4 + $0x8] sm:$0xff] 0.0
        %417 = vst [vmem:[#allocation4 + $0x10] sm:$0xff] 0.0
        %418 = vst [vmem:[#allocation4 + $0x18] sm:$0xff] 0.0
        %v419 = vld [vmem:[%s347] sm:$0xff]
        %v420 = vld [vmem:[%s347 + $0x8] sm:$0xff]
        %v421 = vld [vmem:[%s347 + $0x10] sm:$0xff]
        %v422 = vld [vmem:[%s347 + $0x18] sm:$0xff]
        %v423 = vld [vmem:[%s400] sm:$0xff]
        %v424 = vld [vmem:[%s400 + $0x10] sm:$0xff]
        %v425 = vld [vmem:[%s400 + $0x20] sm:$0xff]
        %v426 = vld [vmem:[%s400 + $0x30] sm:$0xff]
        %v427 = vld [vmem:[%s407] sm:$0xff]
        %v428 = vld [vmem:[%s407 + $0x10] sm:$0xff]
        %v429 = vld [vmem:[%s407 + $0x20] sm:$0xff]
        %v430 = vld [vmem:[%s407 + $0x30] sm:$0xff]
        %431 = vxpose.xlu0.b32.start [1/16] %v423, 128
        %432 = vxpose.xlu0.b32.cont [2/16] %v424, 128
        %433 = vxpose.xlu0.b32.cont [3/16] 0.0, 128
        %434 = vxpose.xlu0.b32.cont [4/16] 0.0, 128
        %435 = vxpose.xlu0.b32.cont [5/16] 0.0, 128
        %436 = vxpose.xlu0.b32.cont [6/16] 0.0, 128
        %437 = vxpose.xlu0.b32.cont [7/16] 0.0, 128
        %438 = vxpose.xlu0.b32.cont [8/16] 0.0, 128
        %439 = vxpose.xlu0.b32.cont [9/16] 0.0, 128
        %440 = vxpose.xlu0.b32.cont [10/16] 0.0, 128
        %441 = vxpose.xlu0.b32.cont [11/16] 0.0, 128
        %442 = vxpose.xlu0.b32.cont [12/16] 0.0, 128
        %443 = vxpose.xlu0.b32.cont [13/16] 0.0, 128
        %444 = vxpose.xlu0.b32.cont [14/16] 0.0, 128
        %445 = vxpose.xlu0.b32.cont [15/16] 0.0, 128
        %446 = vxpose.xlu0.b32.end [16/16] 0.0, 128
        %v447 = vpop.trf.xlu0
        %v448 = vpop.trf.xlu0
        %v449 = vpop.trf.xlu0
        %v450 = vpop.trf.xlu0
        %v451 = vpop.trf.xlu0
        %v452 = vpop.trf.xlu0
        %v453 = vpop.trf.xlu0
        %v454 = vpop.trf.xlu0
        %v455 = vpop.trf.xlu0
        %v456 = vpop.trf.xlu0
        %v457 = vpop.trf.xlu0
        %v458 = vpop.trf.xlu0
        %v459 = vpop.trf.xlu0
        %v460 = vpop.trf.xlu0
        %v461 = vpop.trf.xlu0
        %v462 = vpop.trf.xlu0
        %vm463 = vcmask 130048
        %v465 = vsel %vm463, %v447, 0
        %v468 = vsel %vm463, %v448, 0
        %v471 = vsel %vm463, %v449, 0
        %v474 = vsel %vm463, %v450, 0
        %v477 = vsel %vm463, %v451, 0
        %v480 = vsel %vm463, %v452, 0
        %v483 = vsel %vm463, %v453, 0
        %v486 = vsel %vm463, %v454, 0
        %v489 = vsel %vm463, %v455, 0
        %v492 = vsel %vm463, %v456, 0
        %v495 = vsel %vm463, %v457, 0
        %v498 = vsel %vm463, %v458, 0
        %v501 = vsel %vm463, %v459, 0
        %v504 = vsel %vm463, %v460, 0
        %v507 = vsel %vm463, %v461, 0
        %v510 = vsel %vm463, %v462, 0
        %512 = vmatpush.msra.mxu0 0.0
        %513 = vmatpush.msra.mxu0 0.0
        %514 = vmatpush.msra.mxu0 0.0
        %515 = vmatpush.msra.mxu0 0.0
        %516 = vmatpush.msra.mxu0 0.0
        %517 = vmatpush.msra.mxu0 0.0
        %518 = vmatpush.msra.mxu0 0.0
        %519 = vmatpush.msra.mxu0 0.0
        %520 = vmatpush.msra.mxu0 0.0
        %521 = vmatpush.msra.mxu0 0.0
        %522 = vmatpush.msra.mxu0 0.0
        %523 = vmatpush.msra.mxu0 0.0
        %524 = vmatpush.msra.mxu0 0.0
        %525 = vmatpush.msra.mxu0 0.0
        %526 = vmatpush.msra.mxu0 %v420
        %527 = vmatpush.msra.mxu0 %v419
        %528 = vmatmul.f32.gmra.mxu0 %v465
        %v529 = vpop.f32.mrf.mxu0
        %v530 = vadd.f32 0.0, %v529
        %531 = vmatmul.f32.gmra.mxu0 %v468
        %v532 = vpop.f32.mrf.mxu0
        %v533 = vadd.f32 0.0, %v532
        %534 = vmatmul.f32.gmra.mxu0 %v471
        %v535 = vpop.f32.mrf.mxu0
        %v536 = vadd.f32 0.0, %v535
        %537 = vmatmul.f32.gmra.mxu0 %v474
        %v538 = vpop.f32.mrf.mxu0
        %v539 = vadd.f32 0.0, %v538
        %540 = vmatmul.f32.gmra.mxu0 %v477
        %v541 = vpop.f32.mrf.mxu0
        %v542 = vadd.f32 0.0, %v541
        %543 = vmatmul.f32.gmra.mxu0 %v480
        %v544 = vpop.f32.mrf.mxu0
        %v545 = vadd.f32 0.0, %v544
        %546 = vmatmul.f32.gmra.mxu0 %v483
        %v547 = vpop.f32.mrf.mxu0
        %v548 = vadd.f32 0.0, %v547
        %549 = vmatmul.f32.gmra.mxu0 %v486
        %v550 = vpop.f32.mrf.mxu0
        %v551 = vadd.f32 0.0, %v550
        %552 = vmatmul.f32.gmra.mxu0 %v489
        %v553 = vpop.f32.mrf.mxu0
        %v554 = vadd.f32 0.0, %v553
        %555 = vmatmul.f32.gmra.mxu0 %v492
        %v556 = vpop.f32.mrf.mxu0
        %v557 = vadd.f32 0.0, %v556
        %558 = vmatmul.f32.gmra.mxu0 %v495
        %v559 = vpop.f32.mrf.mxu0
        %v560 = vadd.f32 0.0, %v559
        %561 = vmatmul.f32.gmra.mxu0 %v498
        %v562 = vpop.f32.mrf.mxu0
        %v563 = vadd.f32 0.0, %v562
        %564 = vmatmul.f32.gmra.mxu0 %v501
        %v565 = vpop.f32.mrf.mxu0
        %v566 = vadd.f32 0.0, %v565
        %567 = vmatmul.f32.gmra.mxu0 %v504
        %v568 = vpop.f32.mrf.mxu0
        %v569 = vadd.f32 0.0, %v568
        %570 = vmatmul.f32.gmra.mxu0 %v507
        %v571 = vpop.f32.mrf.mxu0
        %v572 = vadd.f32 0.0, %v571
        %573 = vmatmul.f32.gmra.mxu0 %v510
        %v574 = vpop.f32.mrf.mxu0
        %v575 = vadd.f32 0.0, %v574
        %576 = vdwg.mxu0
        %577 = vxpose.xlu0.b32.start [1/16] %v425, 128
        %578 = vxpose.xlu0.b32.cont [2/16] %v426, 128
        %579 = vxpose.xlu0.b32.cont [3/16] 0.0, 128
        %580 = vxpose.xlu0.b32.cont [4/16] 0.0, 128
        %581 = vxpose.xlu0.b32.cont [5/16] 0.0, 128
        %582 = vxpose.xlu0.b32.cont [6/16] 0.0, 128
        %583 = vxpose.xlu0.b32.cont [7/16] 0.0, 128
        %584 = vxpose.xlu0.b32.cont [8/16] 0.0, 128
        %585 = vxpose.xlu0.b32.cont [9/16] 0.0, 128
        %586 = vxpose.xlu0.b32.cont [10/16] 0.0, 128
        %587 = vxpose.xlu0.b32.cont [11/16] 0.0, 128
        %588 = vxpose.xlu0.b32.cont [12/16] 0.0, 128
        %589 = vxpose.xlu0.b32.cont [13/16] 0.0, 128
        %590 = vxpose.xlu0.b32.cont [14/16] 0.0, 128
        %591 = vxpose.xlu0.b32.cont [15/16] 0.0, 128
        %592 = vxpose.xlu0.b32.end [16/16] 0.0, 128
        %v593 = vpop.trf.xlu0
        %v594 = vpop.trf.xlu0
        %v595 = vpop.trf.xlu0
        %v596 = vpop.trf.xlu0
        %v597 = vpop.trf.xlu0
        %v598 = vpop.trf.xlu0
        %v599 = vpop.trf.xlu0
        %v600 = vpop.trf.xlu0
        %v601 = vpop.trf.xlu0
        %v602 = vpop.trf.xlu0
        %v603 = vpop.trf.xlu0
        %v604 = vpop.trf.xlu0
        %v605 = vpop.trf.xlu0
        %v606 = vpop.trf.xlu0
        %v607 = vpop.trf.xlu0
        %v608 = vpop.trf.xlu0
        %v610 = vsel %vm463, %v593, 0
        %v613 = vsel %vm463, %v594, 0
        %v616 = vsel %vm463, %v595, 0
        %v619 = vsel %vm463, %v596, 0
        %v622 = vsel %vm463, %v597, 0
        %v625 = vsel %vm463, %v598, 0
        %v628 = vsel %vm463, %v599, 0
        %v631 = vsel %vm463, %v600, 0
        %v634 = vsel %vm463, %v601, 0
        %v637 = vsel %vm463, %v602, 0
        %v640 = vsel %vm463, %v603, 0
        %v643 = vsel %vm463, %v604, 0
        %v646 = vsel %vm463, %v605, 0
        %v649 = vsel %vm463, %v606, 0
        %v652 = vsel %vm463, %v607, 0
        %v655 = vsel %vm463, %v608, 0
        %657 = vmatpush.msra.mxu0 0.0
        %658 = vmatpush.msra.mxu0 0.0
        %659 = vmatpush.msra.mxu0 0.0
        %660 = vmatpush.msra.mxu0 0.0
        %661 = vmatpush.msra.mxu0 0.0
        %662 = vmatpush.msra.mxu0 0.0
        %663 = vmatpush.msra.mxu0 0.0
        %664 = vmatpush.msra.mxu0 0.0
        %665 = vmatpush.msra.mxu0 0.0
        %666 = vmatpush.msra.mxu0 0.0
        %667 = vmatpush.msra.mxu0 0.0
        %668 = vmatpush.msra.mxu0 0.0
        %669 = vmatpush.msra.mxu0 0.0
        %670 = vmatpush.msra.mxu0 0.0
        %671 = vmatpush.msra.mxu0 %v422
        %672 = vmatpush.msra.mxu0 %v421
        %673 = vmatmul.f32.gmra.mxu0 %v610
        %v674 = vpop.f32.mrf.mxu0
        %v675 = vadd.f32 0.0, %v674
        %676 = vmatmul.f32.gmra.mxu0 %v613
        %v677 = vpop.f32.mrf.mxu0
        %v678 = vadd.f32 0.0, %v677
        %679 = vmatmul.f32.gmra.mxu0 %v616
        %v680 = vpop.f32.mrf.mxu0
        %v681 = vadd.f32 0.0, %v680
        %682 = vmatmul.f32.gmra.mxu0 %v619
        %v683 = vpop.f32.mrf.mxu0
        %v684 = vadd.f32 0.0, %v683
        %685 = vmatmul.f32.gmra.mxu0 %v622
        %v686 = vpop.f32.mrf.mxu0
        %v687 = vadd.f32 0.0, %v686
        %688 = vmatmul.f32.gmra.mxu0 %v625
        %v689 = vpop.f32.mrf.mxu0
        %v690 = vadd.f32 0.0, %v689
        %691 = vmatmul.f32.gmra.mxu0 %v628
        %v692 = vpop.f32.mrf.mxu0
        %v693 = vadd.f32 0.0, %v692
        %694 = vmatmul.f32.gmra.mxu0 %v631
        %v695 = vpop.f32.mrf.mxu0
        %v696 = vadd.f32 0.0, %v695
        %697 = vmatmul.f32.gmra.mxu0 %v634
        %v698 = vpop.f32.mrf.mxu0
        %v699 = vadd.f32 0.0, %v698
        %700 = vmatmul.f32.gmra.mxu0 %v637
        %v701 = vpop.f32.mrf.mxu0
        %v702 = vadd.f32 0.0, %v701
        %703 = vmatmul.f32.gmra.mxu0 %v640
        %v704 = vpop.f32.mrf.mxu0
        %v705 = vadd.f32 0.0, %v704
        %706 = vmatmul.f32.gmra.mxu0 %v643
        %v707 = vpop.f32.mrf.mxu0
        %v708 = vadd.f32 0.0, %v707
        %709 = vmatmul.f32.gmra.mxu0 %v646
        %v710 = vpop.f32.mrf.mxu0
        %v711 = vadd.f32 0.0, %v710
        %712 = vmatmul.f32.gmra.mxu0 %v649
        %v713 = vpop.f32.mrf.mxu0
        %v714 = vadd.f32 0.0, %v713
        %715 = vmatmul.f32.gmra.mxu0 %v652
        %v716 = vpop.f32.mrf.mxu0
        %v717 = vadd.f32 0.0, %v716
        %718 = vmatmul.f32.gmra.mxu0 %v655
        %v719 = vpop.f32.mrf.mxu0
        %v720 = vadd.f32 0.0, %v719
        %721 = vdwg.mxu0
        %v722 = vld [vmem:[#allocation2] sm:$0x1]
        %v723 = vld [vmem:[#allocation2 + $0x1] sm:$0x1]
        %v724 = vmax.f32 %v530, %v536
        %v725 = vmax.f32 %v533, %v539
        %v726 = vmax.f32 %v724, %v542
        %v727 = vmax.f32 %v725, %v545
        %v728 = vmax.f32 %v726, %v548
        %v729 = vmax.f32 %v727, %v551
        %v730 = vmax.f32 %v728, %v554
        %v731 = vmax.f32 %v729, %v557
        %v732 = vmax.f32 %v730, %v560
        %v733 = vmax.f32 %v731, %v563
        %v734 = vmax.f32 %v732, %v566
        %v735 = vmax.f32 %v733, %v569
        %v736 = vmax.f32 %v734, %v572
        %v737 = vmax.f32 %v735, %v575
        %v738 = vmax.f32 %v736, %v737
        %v739 = vrot.slane %v738, 4
        %v740 = vmax.f32 %v738, %v739
        %v741 = vrot.slane %v740, 2
        %v742 = vmax.f32 %v740, %v741
        %v743 = vrot.slane %v742, 1
        %v744 = vmax.f32 %v742, %v743
        %v745 = vmax.f32 %v675, %v681
        %v746 = vmax.f32 %v678, %v684
        %v747 = vmax.f32 %v745, %v687
        %v748 = vmax.f32 %v746, %v690
        %v749 = vmax.f32 %v747, %v693
        %v750 = vmax.f32 %v748, %v696
        %v751 = vmax.f32 %v749, %v699
        %v752 = vmax.f32 %v750, %v702
        %v753 = vmax.f32 %v751, %v705
        %v754 = vmax.f32 %v752, %v708
        %v755 = vmax.f32 %v753, %v711
        %v756 = vmax.f32 %v754, %v714
        %v757 = vmax.f32 %v755, %v717
        %v758 = vmax.f32 %v756, %v720
        %v759 = vmax.f32 %v757, %v758
        %v760 = vrot.slane %v759, 4
        %v761 = vmax.f32 %v759, %v760
        %v762 = vrot.slane %v761, 2
        %v763 = vmax.f32 %v761, %v762
        %v764 = vrot.slane %v763, 1
        %v765 = vmax.f32 %v763, %v764
        %v766 = vmax.f32 %v722, %v744
        %v767 = vmax.f32 %v723, %v765
        %v768 = vsub.f32 %v722, %v766
        %v769 = vsub.f32 %v723, %v767
        %v770 = vmul.f32 %v768, 1.442695
        %v771 = vpow.pop %v770
        %v772 = vmul.f32 %v769, 1.442695
        %v773 = vpow.pop %v772
        %v776 = vperm.slane %v766, 0
        %v777 = vperm.slane %v767, 0
        %v780 = vsub.f32 %v530, %v776
        %v781 = vsub.f32 %v533, %v776
        %v782 = vsub.f32 %v536, %v776
        %v783 = vsub.f32 %v539, %v776
        %v784 = vsub.f32 %v542, %v776
        %v785 = vsub.f32 %v545, %v776
        %v786 = vsub.f32 %v548, %v776
        %v787 = vsub.f32 %v551, %v776
        %v788 = vsub.f32 %v554, %v776
        %v789 = vsub.f32 %v557, %v776
        %v790 = vsub.f32 %v560, %v776
        %v791 = vsub.f32 %v563, %v776
        %v792 = vsub.f32 %v566, %v776
        %v793 = vsub.f32 %v569, %v776
        %v794 = vsub.f32 %v572, %v776
        %v795 = vsub.f32 %v575, %v776
        %v796 = vsub.f32 %v675, %v777
        %v797 = vsub.f32 %v678, %v777
        %v798 = vsub.f32 %v681, %v777
        %v799 = vsub.f32 %v684, %v777
        %v800 = vsub.f32 %v687, %v777
        %v801 = vsub.f32 %v690, %v777
        %v802 = vsub.f32 %v693, %v777
        %v803 = vsub.f32 %v696, %v777
        %v804 = vsub.f32 %v699, %v777
        %v805 = vsub.f32 %v702, %v777
        %v806 = vsub.f32 %v705, %v777
        %v807 = vsub.f32 %v708, %v777
        %v808 = vsub.f32 %v711, %v777
        %v809 = vsub.f32 %v714, %v777
        %v810 = vsub.f32 %v717, %v777
        %v811 = vsub.f32 %v720, %v777
        %v812 = vmul.f32 %v780, 1.442695
        %v813 = vpow.pop %v812
        %v814 = vmul.f32 %v781, 1.442695
        %v815 = vpow.pop %v814
        %v816 = vmul.f32 %v782, 1.442695
        %v817 = vpow.pop %v816
        %v818 = vmul.f32 %v783, 1.442695
        %v819 = vpow.pop %v818
        %v820 = vmul.f32 %v784, 1.442695
        %v821 = vpow.pop %v820
        %v822 = vmul.f32 %v785, 1.442695
        %v823 = vpow.pop %v822
        %v824 = vmul.f32 %v786, 1.442695
        %v825 = vpow.pop %v824
        %v826 = vmul.f32 %v787, 1.442695
        %v827 = vpow.pop %v826
        %v828 = vmul.f32 %v788, 1.442695
        %v829 = vpow.pop %v828
        %v830 = vmul.f32 %v789, 1.442695
        %v831 = vpow.pop %v830
        %v832 = vmul.f32 %v790, 1.442695
        %v833 = vpow.pop %v832
        %v834 = vmul.f32 %v791, 1.442695
        %v835 = vpow.pop %v834
        %v836 = vmul.f32 %v792, 1.442695
        %v837 = vpow.pop %v836
        %v838 = vmul.f32 %v793, 1.442695
        %v839 = vpow.pop %v838
        %v840 = vmul.f32 %v794, 1.442695
        %v841 = vpow.pop %v840
        %v842 = vmul.f32 %v795, 1.442695
        %v843 = vpow.pop %v842
        %v844 = vmul.f32 %v796, 1.442695
        %v845 = vpow.pop %v844
        %v846 = vmul.f32 %v797, 1.442695
        %v847 = vpow.pop %v846
        %v848 = vmul.f32 %v798, 1.442695
        %v849 = vpow.pop %v848
        %v850 = vmul.f32 %v799, 1.442695
        %v851 = vpow.pop %v850
        %v852 = vmul.f32 %v800, 1.442695
        %v853 = vpow.pop %v852
        %v854 = vmul.f32 %v801, 1.442695
        %v855 = vpow.pop %v854
        %v856 = vmul.f32 %v802, 1.442695
        %v857 = vpow.pop %v856
        %v858 = vmul.f32 %v803, 1.442695
        %v859 = vpow.pop %v858
        %v860 = vmul.f32 %v804, 1.442695
        %v861 = vpow.pop %v860
        %v862 = vmul.f32 %v805, 1.442695
        %v863 = vpow.pop %v862
        %v864 = vmul.f32 %v806, 1.442695
        %v865 = vpow.pop %v864
        %v866 = vmul.f32 %v807, 1.442695
        %v867 = vpow.pop %v866
        %v868 = vmul.f32 %v808, 1.442695
        %v869 = vpow.pop %v868
        %v870 = vmul.f32 %v809, 1.442695
        %v871 = vpow.pop %v870
        %v872 = vmul.f32 %v810, 1.442695
        %v873 = vpow.pop %v872
        %v874 = vmul.f32 %v811, 1.442695
        %v875 = vpow.pop %v874
        %v876 = vld [vmem:[#allocation3] sm:$0x1]
        %v877 = vld [vmem:[#allocation3 + $0x1] sm:$0x1]
        %v878 = vmul.f32 %v771, %v876
        %v879 = vmul.f32 %v773, %v877
        %v880 = vadd.f32 %v813, %v815
        %v881 = vadd.f32 %v880, %v817
        %v882 = vadd.f32 %v881, %v819
        %v883 = vadd.f32 %v882, %v821
        %v884 = vadd.f32 %v883, %v823
        %v885 = vadd.f32 %v884, %v825
        %v886 = vadd.f32 %v885, %v827
        %v887 = vadd.f32 %v886, %v829
        %v888 = vadd.f32 %v887, %v831
        %v889 = vadd.f32 %v888, %v833
        %v890 = vadd.f32 %v889, %v835
        %v891 = vadd.f32 %v890, %v837
        %v892 = vadd.f32 %v891, %v839
        %v893 = vadd.f32 %v892, %v841
        %v894 = vadd.f32 %v893, %v843
        %v895 = vrot.slane %v894, 4
        %v896 = vadd.f32 %v894, %v895
        %v897 = vrot.slane %v896, 2
        %v898 = vadd.f32 %v896, %v897
        %v899 = vrot.slane %v898, 1
        %v900 = vadd.f32 %v898, %v899
        %v901 = vadd.f32 %v845, %v847
        %v902 = vadd.f32 %v901, %v849
        %v903 = vadd.f32 %v902, %v851
        %v904 = vadd.f32 %v903, %v853
        %v905 = vadd.f32 %v904, %v855
        %v906 = vadd.f32 %v905, %v857
        %v907 = vadd.f32 %v906, %v859
        %v908 = vadd.f32 %v907, %v861
        %v909 = vadd.f32 %v908, %v863
        %v910 = vadd.f32 %v909, %v865
        %v911 = vadd.f32 %v910, %v867
        %v912 = vadd.f32 %v911, %v869
        %v913 = vadd.f32 %v912, %v871
        %v914 = vadd.f32 %v913, %v873
        %v915 = vadd.f32 %v914, %v875
        %v916 = vrot.slane %v915, 4
        %v917 = vadd.f32 %v915, %v916
        %v918 = vrot.slane %v917, 2
        %v919 = vadd.f32 %v917, %v918
        %v920 = vrot.slane %v919, 1
        %v921 = vadd.f32 %v919, %v920
        %v922 = vadd.f32 %v878, %v900
        %v923 = vadd.f32 %v879, %v921
        %924 = vst [vmem:[#allocation3] sm:$0x1] %v922
        %925 = vst [vmem:[#allocation3 + $0x1] sm:$0x1] %v923
        %926 = vmatpush.msra.mxu0 %v843
        %927 = vmatpush.msra.mxu0 %v841
        %928 = vmatpush.msra.mxu0 %v839
        %929 = vmatpush.msra.mxu0 %v837
        %930 = vmatpush.msra.mxu0 %v835
        %931 = vmatpush.msra.mxu0 %v833
        %932 = vmatpush.msra.mxu0 %v831
        %933 = vmatpush.msra.mxu0 %v829
        %934 = vmatpush.msra.mxu0 %v827
        %935 = vmatpush.msra.mxu0 %v825
        %936 = vmatpush.msra.mxu0 %v823
        %937 = vmatpush.msra.mxu0 %v821
        %938 = vmatpush.msra.mxu0 %v819
        %939 = vmatpush.msra.mxu0 %v817
        %940 = vmatpush.msra.mxu0 %v815
        %941 = vmatpush.msra.mxu0 %v813
        %942 = vmatmul.f32.gmra.mxu0 %v427
        %v943 = vpop.f32.mrf.mxu0
        %v944 = vadd.f32 0.0, %v943
        %945 = vmatmul.f32.gmra.mxu0 %v428
        %v946 = vpop.f32.mrf.mxu0
        %v947 = vadd.f32 0.0, %v946
        %948 = vdwg.mxu0
        %949 = vmatpush.msra.mxu0 %v875
        %950 = vmatpush.msra.mxu0 %v873
        %951 = vmatpush.msra.mxu0 %v871
        %952 = vmatpush.msra.mxu0 %v869
        %953 = vmatpush.msra.mxu0 %v867
        %954 = vmatpush.msra.mxu0 %v865
        %955 = vmatpush.msra.mxu0 %v863
        %956 = vmatpush.msra.mxu0 %v861
        %957 = vmatpush.msra.mxu0 %v859
        %958 = vmatpush.msra.mxu0 %v857
        %959 = vmatpush.msra.mxu0 %v855
        %960 = vmatpush.msra.mxu0 %v853
        %961 = vmatpush.msra.mxu0 %v851
        %962 = vmatpush.msra.mxu0 %v849
        %963 = vmatpush.msra.mxu0 %v847
        %964 = vmatpush.msra.mxu0 %v845
        %965 = vmatmul.f32.gmra.mxu0 %v429
        %v966 = vpop.f32.mrf.mxu0
        %v967 = vadd.f32 0.0, %v966
        %968 = vmatmul.f32.gmra.mxu0 %v430
        %v969 = vpop.f32.mrf.mxu0
        %v970 = vadd.f32 0.0, %v969
        %971 = vdwg.mxu0
        %v972 = vld [vmem:[#allocation4] sm:$0xff]
        %v973 = vld [vmem:[#allocation4 + $0x8] sm:$0xff]
        %v974 = vld [vmem:[#allocation4 + $0x10] sm:$0xff]
        %v975 = vld [vmem:[#allocation4 + $0x18] sm:$0xff]
        %v978 = vperm.slane %v771, 0
        %v979 = vperm.slane %v773, 0
        %v982 = vmul.f32 %v978, %v972
        %v983 = vmul.f32 %v978, %v973
        %v984 = vmul.f32 %v979, %v974
        %v985 = vmul.f32 %v979, %v975
        %v986 = vadd.f32 %v982, %v944
        %v987 = vadd.f32 %v983, %v947
        %v988 = vadd.f32 %v984, %v967
        %v989 = vadd.f32 %v985, %v970
        %990 = vst [vmem:[#allocation4] sm:$0xff] %v986
        %991 = vst [vmem:[#allocation4 + $0x8] sm:$0xff] %v987
        %992 = vst [vmem:[#allocation4 + $0x10] sm:$0xff] %v988
        %993 = vst [vmem:[#allocation4 + $0x18] sm:$0xff] %v989
        %994 = vst [vmem:[#allocation2] sm:$0x1] %v766
        %995 = vst [vmem:[#allocation2 + $0x1] sm:$0x1] %v767
        %v996 = vld [vmem:[%s400 + $0x8] sm:$0xff]
        %v997 = vld [vmem:[%s400 + $0x18] sm:$0xff]
        %v998 = vld [vmem:[%s400 + $0x28] sm:$0xff]
        %v999 = vld [vmem:[%s400 + $0x38] sm:$0xff]
        %v1000 = vld [vmem:[%s407 + $0x8] sm:$0xff]
        %v1001 = vld [vmem:[%s407 + $0x18] sm:$0xff]
        %v1002 = vld [vmem:[%s407 + $0x28] sm:$0xff]
        %v1003 = vld [vmem:[%s407 + $0x38] sm:$0xff]
        %1004 = vxpose.xlu0.b32.start [1/16] %v996, 128
        %1005 = vxpose.xlu0.b32.cont [2/16] %v997, 128
        %1006 = vxpose.xlu0.b32.cont [3/16] 0.0, 128
        %1007 = vxpose.xlu0.b32.cont [4/16] 0.0, 128
        %1008 = vxpose.xlu0.b32.cont [5/16] 0.0, 128
        %1009 = vxpose.xlu0.b32.cont [6/16] 0.0, 128
        %1010 = vxpose.xlu0.b32.cont [7/16] 0.0, 128
        %1011 = vxpose.xlu0.b32.cont [8/16] 0.0, 128
        %1012 = vxpose.xlu0.b32.cont [9/16] 0.0, 128
        %1013 = vxpose.xlu0.b32.cont [10/16] 0.0, 128
        %1014 = vxpose.xlu0.b32.cont [11/16] 0.0, 128
        %1015 = vxpose.xlu0.b32.cont [12/16] 0.0, 128
        %1016 = vxpose.xlu0.b32.cont [13/16] 0.0, 128
        %1017 = vxpose.xlu0.b32.cont [14/16] 0.0, 128
        %1018 = vxpose.xlu0.b32.cont [15/16] 0.0, 128
        %1019 = vxpose.xlu0.b32.end [16/16] 0.0, 128
        %v1020 = vpop.trf.xlu0
        %v1021 = vpop.trf.xlu0
        %v1022 = vpop.trf.xlu0
        %v1023 = vpop.trf.xlu0
        %v1024 = vpop.trf.xlu0
        %v1025 = vpop.trf.xlu0
        %v1026 = vpop.trf.xlu0
        %v1027 = vpop.trf.xlu0
        %v1028 = vpop.trf.xlu0
        %v1029 = vpop.trf.xlu0
        %v1030 = vpop.trf.xlu0
        %v1031 = vpop.trf.xlu0
        %v1032 = vpop.trf.xlu0
        %v1033 = vpop.trf.xlu0
        %v1034 = vpop.trf.xlu0
        %v1035 = vpop.trf.xlu0
        %v1037 = vsel %vm463, %v1020, 0
        %v1040 = vsel %vm463, %v1021, 0
        %v1043 = vsel %vm463, %v1022, 0
        %v1046 = vsel %vm463, %v1023, 0
        %v1049 = vsel %vm463, %v1024, 0
        %v1052 = vsel %vm463, %v1025, 0
        %v1055 = vsel %vm463, %v1026, 0
        %v1058 = vsel %vm463, %v1027, 0
        %v1061 = vsel %vm463, %v1028, 0
        %v1064 = vsel %vm463, %v1029, 0
        %v1067 = vsel %vm463, %v1030, 0
        %v1070 = vsel %vm463, %v1031, 0
        %v1073 = vsel %vm463, %v1032, 0
        %v1076 = vsel %vm463, %v1033, 0
        %v1079 = vsel %vm463, %v1034, 0
        %v1082 = vsel %vm463, %v1035, 0
        %1084 = vmatpush.msra.mxu0 0.0
        %1085 = vmatpush.msra.mxu0 0.0
        %1086 = vmatpush.msra.mxu0 0.0
        %1087 = vmatpush.msra.mxu0 0.0
        %1088 = vmatpush.msra.mxu0 0.0
        %1089 = vmatpush.msra.mxu0 0.0
        %1090 = vmatpush.msra.mxu0 0.0
        %1091 = vmatpush.msra.mxu0 0.0
        %1092 = vmatpush.msra.mxu0 0.0
        %1093 = vmatpush.msra.mxu0 0.0
        %1094 = vmatpush.msra.mxu0 0.0
        %1095 = vmatpush.msra.mxu0 0.0
        %1096 = vmatpush.msra.mxu0 0.0
        %1097 = vmatpush.msra.mxu0 0.0
        %1098 = vmatpush.msra.mxu0 %v420
        %1099 = vmatpush.msra.mxu0 %v419
        %1100 = vmatmul.f32.gmra.mxu0 %v1037
        %v1101 = vpop.f32.mrf.mxu0
        %v1102 = vadd.f32 0.0, %v1101
        %1103 = vmatmul.f32.gmra.mxu0 %v1040
        %v1104 = vpop.f32.mrf.mxu0
        %v1105 = vadd.f32 0.0, %v1104
        %1106 = vmatmul.f32.gmra.mxu0 %v1043
        %v1107 = vpop.f32.mrf.mxu0
        %v1108 = vadd.f32 0.0, %v1107
        %1109 = vmatmul.f32.gmra.mxu0 %v1046
        %v1110 = vpop.f32.mrf.mxu0
        %v1111 = vadd.f32 0.0, %v1110
        %1112 = vmatmul.f32.gmra.mxu0 %v1049
        %v1113 = vpop.f32.mrf.mxu0
        %v1114 = vadd.f32 0.0, %v1113
        %1115 = vmatmul.f32.gmra.mxu0 %v1052
        %v1116 = vpop.f32.mrf.mxu0
        %v1117 = vadd.f32 0.0, %v1116
        %1118 = vmatmul.f32.gmra.mxu0 %v1055
        %v1119 = vpop.f32.mrf.mxu0
        %v1120 = vadd.f32 0.0, %v1119
        %1121 = vmatmul.f32.gmra.mxu0 %v1058
        %v1122 = vpop.f32.mrf.mxu0
        %v1123 = vadd.f32 0.0, %v1122
        %1124 = vmatmul.f32.gmra.mxu0 %v1061
        %v1125 = vpop.f32.mrf.mxu0
        %v1126 = vadd.f32 0.0, %v1125
        %1127 = vmatmul.f32.gmra.mxu0 %v1064
        %v1128 = vpop.f32.mrf.mxu0
        %v1129 = vadd.f32 0.0, %v1128
        %1130 = vmatmul.f32.gmra.mxu0 %v1067
        %v1131 = vpop.f32.mrf.mxu0
        %v1132 = vadd.f32 0.0, %v1131
        %1133 = vmatmul.f32.gmra.mxu0 %v1070
        %v1134 = vpop.f32.mrf.mxu0
        %v1135 = vadd.f32 0.0, %v1134
        %1136 = vmatmul.f32.gmra.mxu0 %v1073
        %v1137 = vpop.f32.mrf.mxu0
        %v1138 = vadd.f32 0.0, %v1137
        %1139 = vmatmul.f32.gmra.mxu0 %v1076
        %v1140 = vpop.f32.mrf.mxu0
        %v1141 = vadd.f32 0.0, %v1140
        %1142 = vmatmul.f32.gmra.mxu0 %v1079
        %v1143 = vpop.f32.mrf.mxu0
        %v1144 = vadd.f32 0.0, %v1143
        %1145 = vmatmul.f32.gmra.mxu0 %v1082
        %v1146 = vpop.f32.mrf.mxu0
        %v1147 = vadd.f32 0.0, %v1146
        %1148 = vdwg.mxu0
        %1149 = vxpose.xlu0.b32.start [1/16] %v998, 128
        %1150 = vxpose.xlu0.b32.cont [2/16] %v999, 128
        %1151 = vxpose.xlu0.b32.cont [3/16] 0.0, 128
        %1152 = vxpose.xlu0.b32.cont [4/16] 0.0, 128
        %1153 = vxpose.xlu0.b32.cont [5/16] 0.0, 128
        %1154 = vxpose.xlu0.b32.cont [6/16] 0.0, 128
        %1155 = vxpose.xlu0.b32.cont [7/16] 0.0, 128
        %1156 = vxpose.xlu0.b32.cont [8/16] 0.0, 128
        %1157 = vxpose.xlu0.b32.cont [9/16] 0.0, 128
        %1158 = vxpose.xlu0.b32.cont [10/16] 0.0, 128
        %1159 = vxpose.xlu0.b32.cont [11/16] 0.0, 128
        %1160 = vxpose.xlu0.b32.cont [12/16] 0.0, 128
        %1161 = vxpose.xlu0.b32.cont [13/16] 0.0, 128
        %1162 = vxpose.xlu0.b32.cont [14/16] 0.0, 128
        %1163 = vxpose.xlu0.b32.cont [15/16] 0.0, 128
        %1164 = vxpose.xlu0.b32.end [16/16] 0.0, 128
        %v1165 = vpop.trf.xlu0
        %v1166 = vpop.trf.xlu0
        %v1167 = vpop.trf.xlu0
        %v1168 = vpop.trf.xlu0
        %v1169 = vpop.trf.xlu0
        %v1170 = vpop.trf.xlu0
        %v1171 = vpop.trf.xlu0
        %v1172 = vpop.trf.xlu0
        %v1173 = vpop.trf.xlu0
        %v1174 = vpop.trf.xlu0
        %v1175 = vpop.trf.xlu0
        %v1176 = vpop.trf.xlu0
        %v1177 = vpop.trf.xlu0
        %v1178 = vpop.trf.xlu0
        %v1179 = vpop.trf.xlu0
        %v1180 = vpop.trf.xlu0
        %v1182 = vsel %vm463, %v1165, 0
        %v1185 = vsel %vm463, %v1166, 0
        %v1188 = vsel %vm463, %v1167, 0
        %v1191 = vsel %vm463, %v1168, 0
        %v1194 = vsel %vm463, %v1169, 0
        %v1197 = vsel %vm463, %v1170, 0
        %v1200 = vsel %vm463, %v1171, 0
        %v1203 = vsel %vm463, %v1172, 0
        %v1206 = vsel %vm463, %v1173, 0
        %v1209 = vsel %vm463, %v1174, 0
        %v1212 = vsel %vm463, %v1175, 0
        %v1215 = vsel %vm463, %v1176, 0
        %v1218 = vsel %vm463, %v1177, 0
        %v1221 = vsel %vm463, %v1178, 0
        %v1224 = vsel %vm463, %v1179, 0
        %v1227 = vsel %vm463, %v1180, 0
        %1229 = vmatpush.msra.mxu0 0.0
        %1230 = vmatpush.msra.mxu0 0.0
        %1231 = vmatpush.msra.mxu0 0.0
        %1232 = vmatpush.msra.mxu0 0.0
        %1233 = vmatpush.msra.mxu0 0.0
        %1234 = vmatpush.msra.mxu0 0.0
        %1235 = vmatpush.msra.mxu0 0.0
        %1236 = vmatpush.msra.mxu0 0.0
        %1237 = vmatpush.msra.mxu0 0.0
        %1238 = vmatpush.msra.mxu0 0.0
        %1239 = vmatpush.msra.mxu0 0.0
        %1240 = vmatpush.msra.mxu0 0.0
        %1241 = vmatpush.msra.mxu0 0.0
        %1242 = vmatpush.msra.mxu0 0.0
        %1243 = vmatpush.msra.mxu0 %v422
        %1244 = vmatpush.msra.mxu0 %v421
        %1245 = vmatmul.f32.gmra.mxu0 %v1182
        %v1246 = vpop.f32.mrf.mxu0
        %v1247 = vadd.f32 0.0, %v1246
        %1248 = vmatmul.f32.gmra.mxu0 %v1185
        %v1249 = vpop.f32.mrf.mxu0
        %v1250 = vadd.f32 0.0, %v1249
        %1251 = vmatmul.f32.gmra.mxu0 %v1188
        %v1252 = vpop.f32.mrf.mxu0
        %v1253 = vadd.f32 0.0, %v1252
        %1254 = vmatmul.f32.gmra.mxu0 %v1191
        %v1255 = vpop.f32.mrf.mxu0
        %v1256 = vadd.f32 0.0, %v1255
        %1257 = vmatmul.f32.gmra.mxu0 %v1194
        %v1258 = vpop.f32.mrf.mxu0
        %v1259 = vadd.f32 0.0, %v1258
        %1260 = vmatmul.f32.gmra.mxu0 %v1197
        %v1261 = vpop.f32.mrf.mxu0
        %v1262 = vadd.f32 0.0, %v1261
        %1263 = vmatmul.f32.gmra.mxu0 %v1200
        %v1264 = vpop.f32.mrf.mxu0
        %v1265 = vadd.f32 0.0, %v1264
        %1266 = vmatmul.f32.gmra.mxu0 %v1203
        %v1267 = vpop.f32.mrf.mxu0
        %v1268 = vadd.f32 0.0, %v1267
        %1269 = vmatmul.f32.gmra.mxu0 %v1206
        %v1270 = vpop.f32.mrf.mxu0
        %v1271 = vadd.f32 0.0, %v1270
        %1272 = vmatmul.f32.gmra.mxu0 %v1209
        %v1273 = vpop.f32.mrf.mxu0
        %v1274 = vadd.f32 0.0, %v1273
        %1275 = vmatmul.f32.gmra.mxu0 %v1212
        %v1276 = vpop.f32.mrf.mxu0
        %v1277 = vadd.f32 0.0, %v1276
        %1278 = vmatmul.f32.gmra.mxu0 %v1215
        %v1279 = vpop.f32.mrf.mxu0
        %v1280 = vadd.f32 0.0, %v1279
        %1281 = vmatmul.f32.gmra.mxu0 %v1218
        %v1282 = vpop.f32.mrf.mxu0
        %v1283 = vadd.f32 0.0, %v1282
        %1284 = vmatmul.f32.gmra.mxu0 %v1221
        %v1285 = vpop.f32.mrf.mxu0
        %v1286 = vadd.f32 0.0, %v1285
        %1287 = vmatmul.f32.gmra.mxu0 %v1224
        %v1288 = vpop.f32.mrf.mxu0
        %v1289 = vadd.f32 0.0, %v1288
        %1290 = vmatmul.f32.gmra.mxu0 %v1227
        %v1291 = vpop.f32.mrf.mxu0
        %v1292 = vadd.f32 0.0, %v1291
        %1293 = vdwg.mxu0
        %v1294 = vld [vmem:[#allocation2] sm:$0x1]
        %v1295 = vld [vmem:[#allocation2 + $0x1] sm:$0x1]
        %v1296 = vmax.f32 %v1102, %v1108
        %v1297 = vmax.f32 %v1105, %v1111
        %v1298 = vmax.f32 %v1296, %v1114
        %v1299 = vmax.f32 %v1297, %v1117
        %v1300 = vmax.f32 %v1298, %v1120
        %v1301 = vmax.f32 %v1299, %v1123
        %v1302 = vmax.f32 %v1300, %v1126
        %v1303 = vmax.f32 %v1301, %v1129
        %v1304 = vmax.f32 %v1302, %v1132
        %v1305 = vmax.f32 %v1303, %v1135
        %v1306 = vmax.f32 %v1304, %v1138
        %v1307 = vmax.f32 %v1305, %v1141
        %v1308 = vmax.f32 %v1306, %v1144
        %v1309 = vmax.f32 %v1307, %v1147
        %v1310 = vmax.f32 %v1308, %v1309
        %v1311 = vrot.slane %v1310, 4
        %v1312 = vmax.f32 %v1310, %v1311
        %v1313 = vrot.slane %v1312, 2
        %v1314 = vmax.f32 %v1312, %v1313
        %v1315 = vrot.slane %v1314, 1
        %v1316 = vmax.f32 %v1314, %v1315
        %v1317 = vmax.f32 %v1247, %v1253
        %v1318 = vmax.f32 %v1250, %v1256
        %v1319 = vmax.f32 %v1317, %v1259
        %v1320 = vmax.f32 %v1318, %v1262
        %v1321 = vmax.f32 %v1319, %v1265
        %v1322 = vmax.f32 %v1320, %v1268
        %v1323 = vmax.f32 %v1321, %v1271
        %v1324 = vmax.f32 %v1322, %v1274
        %v1325 = vmax.f32 %v1323, %v1277
        %v1326 = vmax.f32 %v1324, %v1280
        %v1327 = vmax.f32 %v1325, %v1283
        %v1328 = vmax.f32 %v1326, %v1286
        %v1329 = vmax.f32 %v1327, %v1289
        %v1330 = vmax.f32 %v1328, %v1292
        %v1331 = vmax.f32 %v1329, %v1330
        %v1332 = vrot.slane %v1331, 4
        %v1333 = vmax.f32 %v1331, %v1332
        %v1334 = vrot.slane %v1333, 2
        %v1335 = vmax.f32 %v1333, %v1334
        %v1336 = vrot.slane %v1335, 1
        %v1337 = vmax.f32 %v1335, %v1336
        %v1338 = vmax.f32 %v1294, %v1316
        %v1339 = vmax.f32 %v1295, %v1337
        %v1340 = vsub.f32 %v1294, %v1338
        %v1341 = vsub.f32 %v1295, %v1339
        %v1342 = vmul.f32 %v1340, 1.442695
        %v1343 = vpow.pop %v1342
        %v1344 = vmul.f32 %v1341, 1.442695
        %v1345 = vpow.pop %v1344
        %v1348 = vperm.slane %v1338, 0
        %v1349 = vperm.slane %v1339, 0
        %v1352 = vsub.f32 %v1102, %v1348
        %v1353 = vsub.f32 %v1105, %v1348
        %v1354 = vsub.f32 %v1108, %v1348
        %v1355 = vsub.f32 %v1111, %v1348
        %v1356 = vsub.f32 %v1114, %v1348
        %v1357 = vsub.f32 %v1117, %v1348
        %v1358 = vsub.f32 %v1120, %v1348
        %v1359 = vsub.f32 %v1123, %v1348
        %v1360 = vsub.f32 %v1126, %v1348
        %v1361 = vsub.f32 %v1129, %v1348
        %v1362 = vsub.f32 %v1132, %v1348
        %v1363 = vsub.f32 %v1135, %v1348
        %v1364 = vsub.f32 %v1138, %v1348
        %v1365 = vsub.f32 %v1141, %v1348
        %v1366 = vsub.f32 %v1144, %v1348
        %v1367 = vsub.f32 %v1147, %v1348
        %v1368 = vsub.f32 %v1247, %v1349
        %v1369 = vsub.f32 %v1250, %v1349
        %v1370 = vsub.f32 %v1253, %v1349
        %v1371 = vsub.f32 %v1256, %v1349
        %v1372 = vsub.f32 %v1259, %v1349
        %v1373 = vsub.f32 %v1262, %v1349
        %v1374 = vsub.f32 %v1265, %v1349
        %v1375 = vsub.f32 %v1268, %v1349
        %v1376 = vsub.f32 %v1271, %v1349
        %v1377 = vsub.f32 %v1274, %v1349
        %v1378 = vsub.f32 %v1277, %v1349
        %v1379 = vsub.f32 %v1280, %v1349
        %v1380 = vsub.f32 %v1283, %v1349
        %v1381 = vsub.f32 %v1286, %v1349
        %v1382 = vsub.f32 %v1289, %v1349
        %v1383 = vsub.f32 %v1292, %v1349
        %v1384 = vmul.f32 %v1352, 1.442695
        %v1385 = vpow.pop %v1384
        %v1386 = vmul.f32 %v1353, 1.442695
        %v1387 = vpow.pop %v1386
        %v1388 = vmul.f32 %v1354, 1.442695
        %v1389 = vpow.pop %v1388
        %v1390 = vmul.f32 %v1355, 1.442695
        %v1391 = vpow.pop %v1390
        %v1392 = vmul.f32 %v1356, 1.442695
        %v1393 = vpow.pop %v1392
        %v1394 = vmul.f32 %v1357, 1.442695
        %v1395 = vpow.pop %v1394
        %v1396 = vmul.f32 %v1358, 1.442695
        %v1397 = vpow.pop %v1396
        %v1398 = vmul.f32 %v1359, 1.442695
        %v1399 = vpow.pop %v1398
        %v1400 = vmul.f32 %v1360, 1.442695
        %v1401 = vpow.pop %v1400
        %v1402 = vmul.f32 %v1361, 1.442695
        %v1403 = vpow.pop %v1402
        %v1404 = vmul.f32 %v1362, 1.442695
        %v1405 = vpow.pop %v1404
        %v1406 = vmul.f32 %v1363, 1.442695
        %v1407 = vpow.pop %v1406
        %v1408 = vmul.f32 %v1364, 1.442695
        %v1409 = vpow.pop %v1408
        %v1410 = vmul.f32 %v1365, 1.442695
        %v1411 = vpow.pop %v1410
        %v1412 = vmul.f32 %v1366, 1.442695
        %v1413 = vpow.pop %v1412
        %v1414 = vmul.f32 %v1367, 1.442695
        %v1415 = vpow.pop %v1414
        %v1416 = vmul.f32 %v1368, 1.442695
        %v1417 = vpow.pop %v1416
        %v1418 = vmul.f32 %v1369, 1.442695
        %v1419 = vpow.pop %v1418
        %v1420 = vmul.f32 %v1370, 1.442695
        %v1421 = vpow.pop %v1420
        %v1422 = vmul.f32 %v1371, 1.442695
        %v1423 = vpow.pop %v1422
        %v1424 = vmul.f32 %v1372, 1.442695
        %v1425 = vpow.pop %v1424
        %v1426 = vmul.f32 %v1373, 1.442695
        %v1427 = vpow.pop %v1426
        %v1428 = vmul.f32 %v1374, 1.442695
        %v1429 = vpow.pop %v1428
        %v1430 = vmul.f32 %v1375, 1.442695
        %v1431 = vpow.pop %v1430
        %v1432 = vmul.f32 %v1376, 1.442695
        %v1433 = vpow.pop %v1432
        %v1434 = vmul.f32 %v1377, 1.442695
        %v1435 = vpow.pop %v1434
        %v1436 = vmul.f32 %v1378, 1.442695
        %v1437 = vpow.pop %v1436
        %v1438 = vmul.f32 %v1379, 1.442695
        %v1439 = vpow.pop %v1438
        %v1440 = vmul.f32 %v1380, 1.442695
        %v1441 = vpow.pop %v1440
        %v1442 = vmul.f32 %v1381, 1.442695
        %v1443 = vpow.pop %v1442
        %v1444 = vmul.f32 %v1382, 1.442695
        %v1445 = vpow.pop %v1444
        %v1446 = vmul.f32 %v1383, 1.442695
        %v1447 = vpow.pop %v1446
        %v1448 = vld [vmem:[#allocation3] sm:$0x1]
        %v1449 = vld [vmem:[#allocation3 + $0x1] sm:$0x1]
        %v1450 = vmul.f32 %v1343, %v1448
        %v1451 = vmul.f32 %v1345, %v1449
        %v1452 = vadd.f32 %v1385, %v1387
        %v1453 = vadd.f32 %v1452, %v1389
        %v1454 = vadd.f32 %v1453, %v1391
        %v1455 = vadd.f32 %v1454, %v1393
        %v1456 = vadd.f32 %v1455, %v1395
        %v1457 = vadd.f32 %v1456, %v1397
        %v1458 = vadd.f32 %v1457, %v1399
        %v1459 = vadd.f32 %v1458, %v1401
        %v1460 = vadd.f32 %v1459, %v1403
        %v1461 = vadd.f32 %v1460, %v1405
        %v1462 = vadd.f32 %v1461, %v1407
        %v1463 = vadd.f32 %v1462, %v1409
        %v1464 = vadd.f32 %v1463, %v1411
        %v1465 = vadd.f32 %v1464, %v1413
        %v1466 = vadd.f32 %v1465, %v1415
        %v1467 = vrot.slane %v1466, 4
        %v1468 = vadd.f32 %v1466, %v1467
        %v1469 = vrot.slane %v1468, 2
        %v1470 = vadd.f32 %v1468, %v1469
        %v1471 = vrot.slane %v1470, 1
        %v1472 = vadd.f32 %v1470, %v1471
        %v1473 = vadd.f32 %v1417, %v1419
        %v1474 = vadd.f32 %v1473, %v1421
        %v1475 = vadd.f32 %v1474, %v1423
        %v1476 = vadd.f32 %v1475, %v1425
        %v1477 = vadd.f32 %v1476, %v1427
        %v1478 = vadd.f32 %v1477, %v1429
        %v1479 = vadd.f32 %v1478, %v1431
        %v1480 = vadd.f32 %v1479, %v1433
        %v1481 = vadd.f32 %v1480, %v1435
        %v1482 = vadd.f32 %v1481, %v1437
        %v1483 = vadd.f32 %v1482, %v1439
        %v1484 = vadd.f32 %v1483, %v1441
        %v1485 = vadd.f32 %v1484, %v1443
        %v1486 = vadd.f32 %v1485, %v1445
        %v1487 = vadd.f32 %v1486, %v1447
        %v1488 = vrot.slane %v1487, 4
        %v1489 = vadd.f32 %v1487, %v1488
        %v1490 = vrot.slane %v1489, 2
        %v1491 = vadd.f32 %v1489, %v1490
        %v1492 = vrot.slane %v1491, 1
        %v1493 = vadd.f32 %v1491, %v1492
        %v1494 = vadd.f32 %v1450, %v1472
        %v1495 = vadd.f32 %v1451, %v1493
        %1496 = vst [vmem:[#allocation3] sm:$0x1] %v1494
        %1497 = vst [vmem:[#allocation3 + $0x1] sm:$0x1] %v1495
        %1498 = vmatpush.msra.mxu0 %v1415
        %1499 = vmatpush.msra.mxu0 %v1413
        %1500 = vmatpush.msra.mxu0 %v1411
        %1501 = vmatpush.msra.mxu0 %v1409
        %1502 = vmatpush.msra.mxu0 %v1407
        %1503 = vmatpush.msra.mxu0 %v1405
        %1504 = vmatpush.msra.mxu0 %v1403
        %1505 = vmatpush.msra.mxu0 %v1401
        %1506 = vmatpush.msra.mxu0 %v1399
        %1507 = vmatpush.msra.mxu0 %v1397
        %1508 = vmatpush.msra.mxu0 %v1395
        %1509 = vmatpush.msra.mxu0 %v1393
        %1510 = vmatpush.msra.mxu0 %v1391
        %1511 = vmatpush.msra.mxu0 %v1389
        %1512 = vmatpush.msra.mxu0 %v1387
        %1513 = vmatpush.msra.mxu0 %v1385
        %1514 = vmatmul.f32.gmra.mxu0 %v1000
        %v1515 = vpop.f32.mrf.mxu0
        %v1516 = vadd.f32 0.0, %v1515
        %1517 = vmatmul.f32.gmra.mxu0 %v1001
        %v1518 = vpop.f32.mrf.mxu0
        %v1519 = vadd.f32 0.0, %v1518
        %1520 = vdwg.mxu0
        %1521 = vmatpush.msra.mxu0 %v1447
        %1522 = vmatpush.msra.mxu0 %v1445
        %1523 = vmatpush.msra.mxu0 %v1443
        %1524 = vmatpush.msra.mxu0 %v1441
        %1525 = vmatpush.msra.mxu0 %v1439
        %1526 = vmatpush.msra.mxu0 %v1437
        %1527 = vmatpush.msra.mxu0 %v1435
        %1528 = vmatpush.msra.mxu0 %v1433
        %1529 = vmatpush.msra.mxu0 %v1431
        %1530 = vmatpush.msra.mxu0 %v1429
        %1531 = vmatpush.msra.mxu0 %v1427
        %1532 = vmatpush.msra.mxu0 %v1425
        %1533 = vmatpush.msra.mxu0 %v1423
        %1534 = vmatpush.msra.mxu0 %v1421
        %1535 = vmatpush.msra.mxu0 %v1419
        %1536 = vmatpush.msra.mxu0 %v1417
        %1537 = vmatmul.f32.gmra.mxu0 %v1002
        %v1538 = vpop.f32.mrf.mxu0
        %v1539 = vadd.f32 0.0, %v1538
        %1540 = vmatmul.f32.gmra.mxu0 %v1003
        %v1541 = vpop.f32.mrf.mxu0
        %v1542 = vadd.f32 0.0, %v1541
        %1543 = vdwg.mxu0
        %v1544 = vld [vmem:[#allocation4] sm:$0xff]
        %v1545 = vld [vmem:[#allocation4 + $0x8] sm:$0xff]
        %v1546 = vld [vmem:[#allocation4 + $0x10] sm:$0xff]
        %v1547 = vld [vmem:[#allocation4 + $0x18] sm:$0xff]
        %v1550 = vperm.slane %v1343, 0
        %v1551 = vperm.slane %v1345, 0
        %v1554 = vmul.f32 %v1550, %v1544
        %v1555 = vmul.f32 %v1550, %v1545
        %v1556 = vmul.f32 %v1551, %v1546
        %v1557 = vmul.f32 %v1551, %v1547
        %v1558 = vadd.f32 %v1554, %v1516
        %v1559 = vadd.f32 %v1555, %v1519
        %v1560 = vadd.f32 %v1556, %v1539
        %v1561 = vadd.f32 %v1557, %v1542
        %1562 = vst [vmem:[#allocation4] sm:$0xff] %v1558
        %1563 = vst [vmem:[#allocation4 + $0x8] sm:$0xff] %v1559
        %1564 = vst [vmem:[#allocation4 + $0x10] sm:$0xff] %v1560
        %1565 = vst [vmem:[#allocation4 + $0x18] sm:$0xff] %v1561
        %1566 = vst [vmem:[#allocation2] sm:$0x1] %v1338
        %1567 = vst [vmem:[#allocation2 + $0x1] sm:$0x1] %v1339
        %v1568 = vld [vmem:[#allocation3] sm:$0x1]
        %v1569 = vld [vmem:[#allocation3 + $0x1] sm:$0x1]
        %v1570 = vrcp.pop %v1568
        %v1571 = vmul.f32 %v1568, %v1570
        %v1572 = vsub.f32 1.0, %v1571
        %v1573 = vmul.f32 %v1570, %v1572
        %v1574 = vadd.f32 %v1570, %v1573
        %vm1575 = vweird.f32 %v1568
        %vm1576 = vweird.f32 %v1570
        %vm1577 = vmor %vm1575, %vm1576
        %v1578 = vsel %vm1577, %v1570, %v1574
        %v1579 = vand.u32 2147483647, %v1568
        %vm1580 = vcmp.eq.f32.partialorder %v1579, 8.507059e+37
        %v1581 = vand.u32 %v1568, 2147483648
        %v1582 = vor.u32 1.1754944e-38, %v1581
        %v1583 = vsel %vm1580, %v1582, %v1578
        %v1584 = vrcp.pop %v1569
        %v1585 = vmul.f32 %v1569, %v1584
        %v1586 = vsub.f32 1.0, %v1585
        %v1587 = vmul.f32 %v1584, %v1586
        %v1588 = vadd.f32 %v1584, %v1587
        %vm1589 = vweird.f32 %v1569
        %vm1590 = vweird.f32 %v1584
        %vm1591 = vmor %vm1589, %vm1590
        %v1592 = vsel %vm1591, %v1584, %v1588
        %v1593 = vand.u32 2147483647, %v1569
        %vm1594 = vcmp.eq.f32.partialorder %v1593, 8.507059e+37
        %v1595 = vand.u32 %v1569, 2147483648
        %v1596 = vor.u32 1.1754944e-38, %v1595
        %v1597 = vsel %vm1594, %v1596, %v1592
        %s1598 = sld [smem:[#allocation5]]
        %v1599 = vld [vmem:[#allocation4] sm:$0xff]
        %v1600 = vld [vmem:[#allocation4 + $0x8] sm:$0xff]
        %v1601 = vld [vmem:[#allocation4 + $0x10] sm:$0xff]
        %v1602 = vld [vmem:[#allocation4 + $0x18] sm:$0xff]
        %v1603 = vstv %s1598
        %v1604 = vmul.f32 %v1603, %v1583
        %v1605 = vmul.f32 %v1603, %v1597
        %v1608 = vperm.slane %v1604, 0
        %v1609 = vperm.slane %v1605, 0
        %v1612 = vmul.f32 %v1599, %v1608
        %v1613 = vmul.f32 %v1600, %v1608
        %v1614 = vmul.f32 %v1601, %v1609
        %v1615 = vmul.f32 %v1602, %v1609
        %v1616 = vld [vmem:[%s354] sm:$0xff]
        %v1617 = vld [vmem:[%s354 + $0x8] sm:$0xff]
        %v1618 = vld [vmem:[%s354 + $0x10] sm:$0xff]
        %v1619 = vld [vmem:[%s354 + $0x18] sm:$0xff]
        %v1620 = vadd.f32 %v1612, %v1616
        %v1621 = vadd.f32 %v1613, %v1617
        %v1622 = vadd.f32 %v1614, %v1618
        %v1623 = vadd.f32 %v1615, %v1619
        %1624 = vst [vmem:[%s393] sm:$0xff] %v1620
        %1625 = vst [vmem:[%s393 + $0x8] sm:$0xff] %v1621
        %1626 = vst [vmem:[%s393 + $0x10] sm:$0xff] %v1622
        %1627 = vst [vmem:[%s393 + $0x18] sm:$0xff] %v1623
        %s1628 = sand.u32 %s168, 1
        %s1629 = sand.u32 %s168, 1
        %s1630 = smul.addr %s1629, 32
        %s1631 = scalar_lea.vmem [#allocation8], %s1630
        // Predicated region
        $region117: #{self_attention_forward.3} parent=107 // pred_check
          %p1632 = pneg %p178
        $region118: #{self_attention_forward.3} parent=107 // pred_check_branch
          %1634 = sbr.rel (%p1632) target = $region120
        $region119: #{self_attention_forward.3} parent=107 // pred_region
          %s1635 = smul.u32 2, %s21
          %s1636 = smul.addr %s1635, 4
          %s1637 = sadd.s32 %s22, %s1636
          %s1638 = smul.addr %s1637, 8
          %s1639 = scalar_lea.vmem %s5, %s1638
          // Predicated region
          $region121: #{self_attention_forward.3} parent=119 // pred_check
            _
          $region122: #{self_attention_forward.3} parent=119 // pred_check_branch
            %1641 = sbr.rel (0) target = $region124
          $region123: #{self_attention_forward.3} parent=119 // pred_region
            // Predicated region
            $region125: #{self_attention_forward.3} parent=123 // pred_check
              _
            $region126: #{self_attention_forward.3} parent=123 // pred_check_branch
              %1643 = sbr.rel (0) target = $region128
            $region127: #{self_attention_forward.3} parent=123 // pred_region
              // Predicated region
              $region140: #{self_attention_forward.3} parent=127 // pred_check
                _
              $region141: #{self_attention_forward.3} parent=127 // pred_check_branch
                %1665 = sbr.rel (0) target = $region143
              $region142: #{self_attention_forward.3} parent=127 // pred_region
                loop: start=0, step=1, limit=1
                $region144: #{self_attention_forward.3} parent=142 // loop_pre_header
                  _
                $region145: #{self_attention_forward.3} parent=142 // loop_header
                  %s1667 = sphi 0, %s1671
                  %p1668 = scmp.ge.s32.totalorder %s1667, 1
                  %s1672 = sphi %s1631, %s1631
                  %s1673 = sphi %s1639, %s1639
                $region146: #{self_attention_forward.3} parent=142 // loop_header_branch
                  %1670 = sbr.rel (%p1668) target = $region150
                $region147: #{self_attention_forward.3} parent=142 // loop_body
                  %v1674 = vld [vmem:[%s1672] sm:$0xff]
                  %1675 = vst [vmem:[%s1673] sm:$0xff] %v1674
                  %v1676 = vld [vmem:[%s1672 + $0x8] sm:$0xff]
                  %1677 = vst [vmem:[%s1673 + $0x10] sm:$0xff] %v1676
                  %v1678 = vld [vmem:[%s1672 + $0x10] sm:$0xff]
                  %1679 = vst [vmem:[%s1673 + $0x20] sm:$0xff] %v1678
                  %v1680 = vld [vmem:[%s1672 + $0x18] sm:$0xff]
                  %1681 = vst [vmem:[%s1673 + $0x30] sm:$0xff] %v1680
                $region148: #{self_attention_forward.3} parent=142 // loop_footer
                  %s1671 = sadd.s32 1, %s1667
                $region149: #{self_attention_forward.3} parent=142 // loop_footer_branch
                  %1666 = sbr.rel target = $region145
                $region150: #{self_attention_forward.3} parent=142 // loop_exit
                  _
              $region143: #{self_attention_forward.3} parent=127 // pred_fallthru
                _
              // Predicated region
              $region151: #{self_attention_forward.3} parent=127 // pred_check
                _
              $region152: #{self_attention_forward.3} parent=127 // pred_check_branch
                %1683 = sbr.rel target = $region154
              $region153: #{self_attention_forward.3} parent=127 // pred_region
                _
              $region154: #{self_attention_forward.3} parent=127 // pred_fallthru
                _
            $region128: #{self_attention_forward.3} parent=123 // pred_fallthru
              _
            // Predicated region
            $region129: #{self_attention_forward.3} parent=123 // pred_check
              _
            $region130: #{self_attention_forward.3} parent=123 // pred_check_branch
              %1645 = sbr.rel target = $region132
            $region131: #{self_attention_forward.3} parent=123 // pred_region
              %s1647 = ssub.s32 256, 1
              loop: start=0, step=1, limit=1
              $region133: #{self_attention_forward.3} parent=131 // loop_pre_header
                _
              $region134: #{self_attention_forward.3} parent=131 // loop_header
                %s1649 = sphi 0, %s1653
                %p1650 = scmp.ge.s32.totalorder %s1649, 1
                %s1654 = sphi %s1631, %s1631
                %s1655 = sphi %s1639, %s1639
              $region135: #{self_attention_forward.3} parent=131 // loop_header_branch
                %1652 = sbr.rel (%p1650) target = $region139
              $region136: #{self_attention_forward.3} parent=131 // loop_body
                %v1656 = vld [vmem:[%s1654] sm:%s1647]
                %1657 = vst [vmem:[%s1655] sm:%s1647] %v1656
                %v1658 = vld [vmem:[%s1654 + $0x8] sm:%s1647]
                %1659 = vst [vmem:[%s1655 + $0x10] sm:%s1647] %v1658
                %v1660 = vld [vmem:[%s1654 + $0x10] sm:%s1647]
                %1661 = vst [vmem:[%s1655 + $0x20] sm:%s1647] %v1660
                %v1662 = vld [vmem:[%s1654 + $0x18] sm:%s1647]
                %1663 = vst [vmem:[%s1655 + $0x30] sm:%s1647] %v1662
              $region137: #{self_attention_forward.3} parent=131 // loop_footer
                %s1653 = sadd.s32 1, %s1649
              $region138: #{self_attention_forward.3} parent=131 // loop_footer_branch
                %1648 = sbr.rel target = $region134
              $region139: #{self_attention_forward.3} parent=131 // loop_exit
                _
            $region132: #{self_attention_forward.3} parent=123 // pred_fallthru
              _
          $region124: #{self_attention_forward.3} parent=119 // pred_fallthru
            _
          %1684 = vnop
        $region120: #{self_attention_forward.3} parent=107 // pred_fallthru
          _
      $region108: #{self_attention_forward.3} parent=5 // pred_fallthru
        _
      %p1685 = scmp.le.s32.totalorder 2, %s12
      // Predicated region
      $region155: #{self_attention_forward.3} parent=5 // pred_check
        %p1686 = pneg %p1685
      $region156: #{self_attention_forward.3} parent=5 // pred_check_branch
        %1688 = sbr.rel (%p1686) target = $region158
      $region157: #{self_attention_forward.3} parent=5 // pred_region
        %s1689 = ssub.s32 %s12, 2
        // Predicated region
        $region159: #{self_attention_forward.3} parent=157 // pred_check
          %p1690 = pneg %p184
        $region160: #{self_attention_forward.3} parent=157 // pred_check_branch
          %1692 = sbr.rel (%p1690) target = $region162
        $region161: #{self_attention_forward.3} parent=157 // pred_region
          %s1693 = sand.u32 %s169, 1
          %s1694 = sand.u32 %s169, 1
          %s1695 = smul.addr %s1694, 32
          %s1696 = scalar_lea.vmem [#allocation8], %s1695
        $region162: #{self_attention_forward.3} parent=157 // pred_fallthru
          _
      $region158: #{self_attention_forward.3} parent=5 // pred_fallthru
        _
    $region6: #{self_attention_forward.3} parent=1 // loop_footer
      %s16 = sadd.s32 1, %s12
    $region7: #{self_attention_forward.3} parent=1 // loop_footer_branch
      %11 = sbr.rel target = $region3
    $region8: #{self_attention_forward.3} parent=1 // loop_exit
      _

</llo_original>
